<compile_context>
chip_gen: v7x
topology: tpu7x:2x2x1
jax: 0.10.0
libtpu: 0.0.40
codegen_flags: <defaults>
</compile_context>

<pallas_src>
import functools

import numpy as np
import jax
import jax.numpy as jnp
from jax.experimental import pallas as pl
from jax.experimental.pallas import tpu as pltpu

EMBED = 256
C_IN, C1, C2 = 3, 32, 64
K = 5
H = W = 16
OH = OW = H - K + 1          # 12  (conv1 "valid" output)
P = 5                        # AdaptiveAvgPool2d(5)
S = P * P                    # 25  conv2 spatial taps
ROWPATCH = K * W * C_IN      # 240 (5 input rows x 16 cols x 3 channels)
ROWPATCH_PAD = 256           # 240 taps + ones-column (bias) + zero pad
ROWCOLS = OW * C1            # 384 (12 output cols x 32 channels)
_VMEM_LIMIT = 48 * 1024 * 1024


def _pool_bins(in_size, out_size):
    """torch AdaptiveAvgPool bin [start, end) pairs along one axis."""
    return [((i * in_size) // out_size, -((-(i + 1) * in_size) // out_size))
            for i in range(out_size)]


_BINS = _pool_bins(OH, P)    # [(0,3), (2,5), (4,8), (7,10), (9,12)]


def _adaptive_pool_matrix(in_size, out_size):
    """(out^2, in^2) torch AdaptiveAvgPool2d matrix (pure-JAX reference only)."""
    M = np.zeros((out_size * out_size, in_size * in_size), dtype=np.float32)
    for i, (hs, he) in enumerate(_pool_bins(in_size, out_size)):
        for j, (ws, we) in enumerate(_pool_bins(in_size, out_size)):
            v = 1.0 / ((he - hs) * (we - ws))
            for h in range(hs, he):
                for w in range(ws, we):
                    M[i * out_size + j, h * in_size + w] = v
    return M


_M1 = _adaptive_pool_matrix(OH, P)            # (25, 144): reference only


def _vanilla_cnn_kernel(xrow_ref, w1r_ref, wcol_ref, b2_ref, wfcs_ref, bfc_ref,
                        o_ref):
    bn = o_ref.shape[0]
    # ---- stage 1: conv1 for all 12 output rows in ONE MXU matmul -----------
    # (12, bn, 256) -> (12*bn, 256) is layout-free (bn % 16 == 0); b1 rides
    # along as the ones-column at K index 240 of w1_row.
    x_all = xrow_ref[...].reshape(OH * bn, ROWPATCH_PAD)        # (12*bn, 256)
    h_all = jnp.dot(x_all, w1r_ref[...], preferred_element_type=jnp.float32)
    h_all = jnp.maximum(h_all.astype(jnp.bfloat16), 0.0)        # relu in bf16

    # ---- stage 2: row-pool (12 -> 5) on VPU, col-pool + conv2 on MXU -------
    # Pooled row p is an unscaled sum of 3-4 sublane-aligned slabs of h_all;
    # the 1/bin_size scale and the column pooling are folded into wcol_ref[p].
    z = None
    for p, (s, e) in enumerate(_BINS):
        g = h_all[s * bn:(s + 1) * bn]                          # (bn, 384)
        for r in range(s + 1, e):
            g = g + h_all[r * bn:(r + 1) * bn]
        zp = jnp.dot(g, wcol_ref[p], preferred_element_type=jnp.float32)
        z = zp if z is None else z + zp
    h2 = jnp.maximum(z + b2_ref[...], 0.0)                      # (bn, 64) f32

    # pool2 (1x1 -> 5x5 replication) + fc collapse to one small matmul.
    out = jnp.dot(h2.astype(jnp.bfloat16), wfcs_ref[...],
                  preferred_element_type=jnp.float32) + bfc_ref[...]
    o_ref[...] = out                                            # (bn, 256) f32


def _round_up(x, m):
    return ((x + m - 1) // m) * m


def _pick_bn(n, block_n):
    """Images per grid step: multiple of 16 (bf16 sublane pack). Larger
    batches get >= 2 grid steps so v7x megacore has work for both cores."""
    block_n = max(16, _round_up(block_n, 16))
    n16 = _round_up(n, 16)
    if n16 > block_n:
        return block_n
    if n16 >= 512:
        return _round_up((n16 + 1) // 2, 16)
    return n16


@functools.partial(jax.jit, static_argnames=("block_n",))
def vanilla_cnn_forward(x_nchw, torch_params, block_n=512):
    w1, b1, w2, b2, wfc, bfc = torch_params
    N = x_nchw.shape[0]
    bn = _pick_bn(N, block_n)
    n_pad = _round_up(N, bn)

    # ---------------- fused / kernel-ready constant weights -----------------
    # conv1 as a shared per-output-row dense matmul, bias folded into K:
    #   w1_row (256, 384): rows dy*48 + w*3 + cin are the taps, row 240 = b1,
    #   rows 241..255 = 0; column index = ox*32 + c.
    w1_perm = jnp.transpose(w1, (2, 3, 1, 0))                  # (kh,kw,cin,cout)
    m = jnp.zeros((K, W, C_IN, OW, C1), w1.dtype)
    for ox in range(OW):
        m = m.at[:, ox:ox + K, :, ox, :].set(w1_perm)
    w1_row = m.reshape(ROWPATCH, ROWCOLS)                      # (240, 384)
    b1_row = jnp.tile(b1, (OW,)).reshape(1, ROWCOLS)
    kpad = jnp.zeros((ROWPATCH_PAD - ROWPATCH - 1, ROWCOLS), w1.dtype)
    w1_row = jnp.concatenate([w1_row, b1_row, kpad], 0).astype(jnp.bfloat16)

    # pool1 column direction + conv2, with the pool1 row scale absorbed:
    #   w_col[p, ox*32+c, o] = (1/row_size_p) * sum_q Pcol[q,ox] * w2[o,c,p,q]
    pcol = np.zeros((P, OW), np.float32)
    for q, (s, e) in enumerate(_BINS):
        pcol[q, s:e] = 1.0 / (e - s)
    row_inv = np.array([1.0 / (e - s) for (s, e) in _BINS], np.float32)
    w_col = jnp.einsum('qx,ocpq->pxco', jnp.asarray(pcol), w2)  # (5,12,32,64)
    w_col = w_col * jnp.asarray(row_inv)[:, None, None, None]
    w_col = w_col.reshape(P, ROWCOLS, C2).astype(jnp.bfloat16)  # (5, 384, 64)

    # pool2 replicates the single conv2 pixel 25x, so fc collapses to wfc_sum
    # with wfc_sum[c, e] = sum_s wfc[e, c*25 + s]  (torch flatten is C-major).
    wfc_sum = wfc.reshape(EMBED, C2, S).sum(axis=2).T.astype(jnp.bfloat16)
    b2_r = b2.reshape(1, C2).astype(jnp.float32)
    bfc_r = bfc.reshape(1, EMBED).astype(jnp.float32)

    # -------- row-im2col input + ones column (bias) + batch padding ---------
    # xrow[oy, n, dy*48 + w*3 + cin] = x[n, cin, oy+dy, w]; column 240 = 1.0
    x = jnp.transpose(x_nchw, (0, 2, 3, 1))                    # NHWC
    rows = jnp.stack([x[:, dy:dy + OH, :, :] for dy in range(K)], axis=2)
    xrow = rows.reshape(N, OH, ROWPATCH)
    xrow = jnp.transpose(xrow, (1, 0, 2))                      # (12, N, 240)
    ones = jnp.ones((OH, N, 1), xrow.dtype)
    zpad = jnp.zeros((OH, N, ROWPATCH_PAD - ROWPATCH - 1), xrow.dtype)
    xrow = jnp.concatenate([xrow, ones, zpad], axis=-1)        # (12, N, 256)
    xrow = jnp.pad(xrow, ((0, 0), (0, n_pad - N), (0, 0)))
    xrow = xrow.astype(jnp.bfloat16)

    out = pl.pallas_call(
        _vanilla_cnn_kernel,
        out_shape=jax.ShapeDtypeStruct((n_pad, EMBED), jnp.float32),
        grid_spec=pltpu.PrefetchScalarGridSpec(
            num_scalar_prefetch=0,
            grid=(n_pad // bn,),
            in_specs=[
                pl.BlockSpec((OH, bn, ROWPATCH_PAD), lambda i: (0, i, 0)),
                pl.BlockSpec((ROWPATCH_PAD, ROWCOLS), lambda i: (0, 0)),
                pl.BlockSpec((P, ROWCOLS, C2), lambda i: (0, 0, 0)),
                pl.BlockSpec((1, C2), lambda i: (0, 0)),
                pl.BlockSpec((C2, EMBED), lambda i: (0, 0)),
                pl.BlockSpec((1, EMBED), lambda i: (0, 0)),
            ],
            out_specs=pl.BlockSpec((bn, EMBED), lambda i: (i, 0)),
        ),
        compiler_params=pltpu.CompilerParams(
            dimension_semantics=("parallel",),
            vmem_limit_bytes=_VMEM_LIMIT),
    )(xrow, w1_row, w_col, b2_r, wfc_sum, bfc_r)
    return out[:N]


def _reference_forward(x_nchw, torch_params):
    """Pure-JAX f32 reference with PyTorch (NCHW / OIHW) semantics."""
    w1, b1, w2, b2, wfc, bfc = torch_params
    dn = ('NCHW', 'OIHW', 'NCHW')
    hi = jax.lax.Precision.HIGHEST
    N = x_nchw.shape[0]
    y = jax.lax.conv_general_dilated(x_nchw, w1, (1, 1), 'VALID',
                                     dimension_numbers=dn, precision=hi)
    y = jnp.maximum(y + b1[None, :, None, None], 0.0)              # (N,32,12,12)
    y = jnp.matmul(y.reshape(N, C1, OH * OW), jnp.asarray(_M1).T,
                   precision=hi).reshape(N, C1, P, P)              # adaptive pool
    y = jax.lax.conv_general_dilated(y, w2, (1, 1), 'VALID',
                                     dimension_numbers=dn, precision=hi)
    y = jnp.maximum(y + b2[None, :, None, None], 0.0)              # (N,64,1,1)
    y = jnp.broadcast_to(y, (N, C2, P, P))                         # pool 1->5
    y = y.reshape(N, C2 * P * P)                                   # torch flatten
    return jnp.matmul(y, wfc.T, precision=hi) + bfc


if __name__ == "__main__":
    key = jax.random.PRNGKey(0)
    kx, k1, k2, k3, k4, k5, k6 = jax.random.split(key, 7)
    N = 2
    x = jax.random.normal(kx, (N, C_IN, H, W), jnp.float32)

    # deterministic synthetic parameters in the PyTorch shapes
    w1 = jax.random.normal(k1, (C1, C_IN, K, K), jnp.float32) * 0.05
    b1 = jax.random.normal(k2, (C1,), jnp.float32) * 0.05
    w2 = jax.random.normal(k3, (C2, C1, K, K), jnp.float32) * 0.05
    b2 = jax.random.normal(k4, (C2,), jnp.float32) * 0.05
    wfc = jax.random.normal(k5, (EMBED, C2 * P * P), jnp.float32) * 0.02
    bfc = jax.random.normal(k6, (EMBED,), jnp.float32) * 0.02
    params = (w1, b1, w2, b2, wfc, bfc)

    out = vanilla_cnn_forward(x, params)
    out = jax.block_until_ready(out)

    ref = _reference_forward(x, params)
    # bf16 matmul inputs / bf16 row-pool sums with f32 accumulation
    np.testing.assert_allclose(np.asarray(out), np.asarray(ref),
                               rtol=3e-2, atol=3e-2)
    print("KERNEL_OK")
</pallas_src>

<mosaic_0001>
module attributes {stable_mosaic.version = 11 : i64} {
  func.func @_vanilla_cnn_kernel(%arg0: i32, %arg1: memref<12x16x256xbf16, #tpu.memory_space<vmem>>, %arg2: memref<256x384xbf16, #tpu.memory_space<vmem>>, %arg3: memref<5x384x64xbf16, #tpu.memory_space<vmem>>, %arg4: memref<1x64xf32, #tpu.memory_space<vmem>>, %arg5: memref<64x256xbf16, #tpu.memory_space<vmem>>, %arg6: memref<1x256xf32, #tpu.memory_space<vmem>>, %arg7: memref<16x256xf32, #tpu.memory_space<vmem>>) attributes {dimension_semantics = [#tpu.dimension_semantics<parallel>], iteration_bounds = array<i64: 1>, scalar_prefetch = 0 : i64, scratch_operands = 0 : i64, tpu.core_type = #tpu.core_type<tc>, window_params = [{transform_indices = @transform_0, window_bounds = array<i64: 12, 16, 256>}, {pipeline_mode = #tpu.pipeline_mode<synchronous>, transform_indices = @transform_1, window_bounds = array<i64: 256, 384>}, {pipeline_mode = #tpu.pipeline_mode<synchronous>, transform_indices = @transform_2, window_bounds = array<i64: 5, 384, 64>}, {pipeline_mode = #tpu.pipeline_mode<synchronous>, transform_indices = @transform_3, window_bounds = array<i64: 1, 64>}, {pipeline_mode = #tpu.pipeline_mode<synchronous>, transform_indices = @transform_4, window_bounds = array<i64: 64, 256>}, {pipeline_mode = #tpu.pipeline_mode<synchronous>, transform_indices = @transform_5, window_bounds = array<i64: 1, 256>}, {transform_indices = @transform_6, window_bounds = array<i64: 16, 256>}]} {
    %c0 = arith.constant 0 : index
    %c0_0 = arith.constant 0 : index
    %c0_1 = arith.constant 0 : index
    %0 = vector.load %arg1[%c0, %c0_0, %c0_1] : memref<12x16x256xbf16, #tpu.memory_space<vmem>>, vector<12x16x256xbf16>
    %1 = vector.shape_cast %0 : vector<12x16x256xbf16> to vector<192x256xbf16>
    %c0_2 = arith.constant 0 : index
    %c0_3 = arith.constant 0 : index
    %2 = vector.load %arg2[%c0_2, %c0_3] : memref<256x384xbf16, #tpu.memory_space<vmem>>, vector<256x384xbf16>
    %cst = arith.constant dense<0.000000e+00> : vector<192x384xf32>
    %3 = tpu.matmul %1, %2, %cst {dimension_numbers = #tpu.dot_dimension_numbers<[1], [0], [0], [1], [0, 0, 1, 1], [], []>} : vector<192x256xbf16>, vector<256x384xbf16>, vector<192x384xf32> -> vector<192x384xf32>
    %4 = arith.truncf %3 : vector<192x384xf32> to vector<192x384xbf16>
    %cst_4 = arith.constant 0.000000e+00 : bf16
    %5 = vector.broadcast %cst_4 : bf16 to vector<192x384xbf16>
    %6 = arith.maximumf %4, %5 : vector<192x384xbf16>
    %7 = vector.extract_strided_slice %6 {offsets = [0, 0], sizes = [16, 384], strides = [1, 1]} : vector<192x384xbf16> to vector<16x384xbf16>
    %8 = vector.extract_strided_slice %6 {offsets = [16, 0], sizes = [16, 384], strides = [1, 1]} : vector<192x384xbf16> to vector<16x384xbf16>
    %9 = arith.addf %7, %8 : vector<16x384xbf16>
    %10 = vector.extract_strided_slice %6 {offsets = [32, 0], sizes = [16, 384], strides = [1, 1]} : vector<192x384xbf16> to vector<16x384xbf16>
    %11 = arith.addf %9, %10 : vector<16x384xbf16>
    %c0_5 = arith.constant 0 : index
    %c0_6 = arith.constant 0 : index
    %c0_7 = arith.constant 0 : index
    %12 = vector.load %arg3[%c0_5, %c0_6, %c0_7] : memref<5x384x64xbf16, #tpu.memory_space<vmem>>, vector<1x384x64xbf16>
    %13 = vector.shape_cast %12 : vector<1x384x64xbf16> to vector<384x64xbf16>
    %cst_8 = arith.constant dense<0.000000e+00> : vector<16x64xf32>
    %14 = tpu.matmul %11, %13, %cst_8 {dimension_numbers = #tpu.dot_dimension_numbers<[1], [0], [0], [1], [0, 0, 1, 1], [], []>} : vector<16x384xbf16>, vector<384x64xbf16>, vector<16x64xf32> -> vector<16x64xf32>
    %15 = vector.extract_strided_slice %6 {offsets = [32, 0], sizes = [16, 384], strides = [1, 1]} : vector<192x384xbf16> to vector<16x384xbf16>
    %16 = vector.extract_strided_slice %6 {offsets = [48, 0], sizes = [16, 384], strides = [1, 1]} : vector<192x384xbf16> to vector<16x384xbf16>
    %17 = arith.addf %15, %16 : vector<16x384xbf16>
    %18 = vector.extract_strided_slice %6 {offsets = [64, 0], sizes = [16, 384], strides = [1, 1]} : vector<192x384xbf16> to vector<16x384xbf16>
    %19 = arith.addf %17, %18 : vector<16x384xbf16>
    %c1 = arith.constant 1 : index
    %c0_9 = arith.constant 0 : index
    %c0_10 = arith.constant 0 : index
    %20 = vector.load %arg3[%c1, %c0_9, %c0_10] : memref<5x384x64xbf16, #tpu.memory_space<vmem>>, vector<1x384x64xbf16>
    %21 = vector.shape_cast %20 : vector<1x384x64xbf16> to vector<384x64xbf16>
    %cst_11 = arith.constant dense<0.000000e+00> : vector<16x64xf32>
    %22 = tpu.matmul %19, %21, %cst_11 {dimension_numbers = #tpu.dot_dimension_numbers<[1], [0], [0], [1], [0, 0, 1, 1], [], []>} : vector<16x384xbf16>, vector<384x64xbf16>, vector<16x64xf32> -> vector<16x64xf32>
    %23 = arith.addf %14, %22 : vector<16x64xf32>
    %24 = vector.extract_strided_slice %6 {offsets = [64, 0], sizes = [16, 384], strides = [1, 1]} : vector<192x384xbf16> to vector<16x384xbf16>
    %25 = vector.extract_strided_slice %6 {offsets = [80, 0], sizes = [16, 384], strides = [1, 1]} : vector<192x384xbf16> to vector<16x384xbf16>
    %26 = arith.addf %24, %25 : vector<16x384xbf16>
    %27 = vector.extract_strided_slice %6 {offsets = [96, 0], sizes = [16, 384], strides = [1, 1]} : vector<192x384xbf16> to vector<16x384xbf16>
    %28 = arith.addf %26, %27 : vector<16x384xbf16>
    %29 = vector.extract_strided_slice %6 {offsets = [112, 0], sizes = [16, 384], strides = [1, 1]} : vector<192x384xbf16> to vector<16x384xbf16>
    %30 = arith.addf %28, %29 : vector<16x384xbf16>
    %c2 = arith.constant 2 : index
    %c0_12 = arith.constant 0 : index
    %c0_13 = arith.constant 0 : index
    %31 = vector.load %arg3[%c2, %c0_12, %c0_13] : memref<5x384x64xbf16, #tpu.memory_space<vmem>>, vector<1x384x64xbf16>
    %32 = vector.shape_cast %31 : vector<1x384x64xbf16> to vector<384x64xbf16>
    %cst_14 = arith.constant dense<0.000000e+00> : vector<16x64xf32>
    %33 = tpu.matmul %30, %32, %cst_14 {dimension_numbers = #tpu.dot_dimension_numbers<[1], [0], [0], [1], [0, 0, 1, 1], [], []>} : vector<16x384xbf16>, vector<384x64xbf16>, vector<16x64xf32> -> vector<16x64xf32>
    %34 = arith.addf %23, %33 : vector<16x64xf32>
    %35 = vector.extract_strided_slice %6 {offsets = [112, 0], sizes = [16, 384], strides = [1, 1]} : vector<192x384xbf16> to vector<16x384xbf16>
    %36 = vector.extract_strided_slice %6 {offsets = [128, 0], sizes = [16, 384], strides = [1, 1]} : vector<192x384xbf16> to vector<16x384xbf16>
    %37 = arith.addf %35, %36 : vector<16x384xbf16>
    %38 = vector.extract_strided_slice %6 {offsets = [144, 0], sizes = [16, 384], strides = [1, 1]} : vector<192x384xbf16> to vector<16x384xbf16>
    %39 = arith.addf %37, %38 : vector<16x384xbf16>
    %c3 = arith.constant 3 : index
    %c0_15 = arith.constant 0 : index
    %c0_16 = arith.constant 0 : index
    %40 = vector.load %arg3[%c3, %c0_15, %c0_16] : memref<5x384x64xbf16, #tpu.memory_space<vmem>>, vector<1x384x64xbf16>
    %41 = vector.shape_cast %40 : vector<1x384x64xbf16> to vector<384x64xbf16>
    %cst_17 = arith.constant dense<0.000000e+00> : vector<16x64xf32>
    %42 = tpu.matmul %39, %41, %cst_17 {dimension_numbers = #tpu.dot_dimension_numbers<[1], [0], [0], [1], [0, 0, 1, 1], [], []>} : vector<16x384xbf16>, vector<384x64xbf16>, vector<16x64xf32> -> vector<16x64xf32>
    %43 = arith.addf %34, %42 : vector<16x64xf32>
    %44 = vector.extract_strided_slice %6 {offsets = [144, 0], sizes = [16, 384], strides = [1, 1]} : vector<192x384xbf16> to vector<16x384xbf16>
    %45 = vector.extract_strided_slice %6 {offsets = [160, 0], sizes = [16, 384], strides = [1, 1]} : vector<192x384xbf16> to vector<16x384xbf16>
    %46 = arith.addf %44, %45 : vector<16x384xbf16>
    %47 = vector.extract_strided_slice %6 {offsets = [176, 0], sizes = [16, 384], strides = [1, 1]} : vector<192x384xbf16> to vector<16x384xbf16>
    %48 = arith.addf %46, %47 : vector<16x384xbf16>
    %c4 = arith.constant 4 : index
    %c0_18 = arith.constant 0 : index
    %c0_19 = arith.constant 0 : index
    %49 = vector.load %arg3[%c4, %c0_18, %c0_19] : memref<5x384x64xbf16, #tpu.memory_space<vmem>>, vector<1x384x64xbf16>
    %50 = vector.shape_cast %49 : vector<1x384x64xbf16> to vector<384x64xbf16>
    %cst_20 = arith.constant dense<0.000000e+00> : vector<16x64xf32>
    %51 = tpu.matmul %48, %50, %cst_20 {dimension_numbers = #tpu.dot_dimension_numbers<[1], [0], [0], [1], [0, 0, 1, 1], [], []>} : vector<16x384xbf16>, vector<384x64xbf16>, vector<16x64xf32> -> vector<16x64xf32>
    %52 = arith.addf %43, %51 : vector<16x64xf32>
    %c0_21 = arith.constant 0 : index
    %c0_22 = arith.constant 0 : index
    %53 = vector.load %arg4[%c0_21, %c0_22] : memref<1x64xf32, #tpu.memory_space<vmem>>, vector<1x64xf32>
    %54 = vector.broadcast %53 : vector<1x64xf32> to vector<16x64xf32>
    %55 = arith.addf %52, %54 : vector<16x64xf32>
    %cst_23 = arith.constant 0.000000e+00 : f32
    %56 = vector.broadcast %cst_23 : f32 to vector<16x64xf32>
    %57 = arith.maximumf %55, %56 : vector<16x64xf32>
    %58 = arith.truncf %57 : vector<16x64xf32> to vector<16x64xbf16>
    %c0_24 = arith.constant 0 : index
    %c0_25 = arith.constant 0 : index
    %59 = vector.load %arg5[%c0_24, %c0_25] : memref<64x256xbf16, #tpu.memory_space<vmem>>, vector<64x256xbf16>
    %cst_26 = arith.constant dense<0.000000e+00> : vector<16x256xf32>
    %60 = tpu.matmul %58, %59, %cst_26 {dimension_numbers = #tpu.dot_dimension_numbers<[1], [0], [0], [1], [0, 0, 1, 1], [], []>} : vector<16x64xbf16>, vector<64x256xbf16>, vector<16x256xf32> -> vector<16x256xf32>
    %c0_27 = arith.constant 0 : index
    %c0_28 = arith.constant 0 : index
    %61 = vector.load %arg6[%c0_27, %c0_28] : memref<1x256xf32, #tpu.memory_space<vmem>>, vector<1x256xf32>
    %62 = vector.broadcast %61 : vector<1x256xf32> to vector<16x256xf32>
    %63 = arith.addf %60, %62 : vector<16x256xf32>
    %c0_29 = arith.constant 0 : index
    %c0_30 = arith.constant 0 : index
    %64 = vector.load %arg7[%c0_29, %c0_30] : memref<16x256xf32, #tpu.memory_space<vmem>>, vector<16x256xf32>
    tpu.vector_store %arg7[%c0_29, %c0_30], %63 {strides = array<i32>} : memref<16x256xf32, #tpu.memory_space<vmem>>, vector<16x256xf32>,
    return
  }
  func.func @transform_0(%arg0: i32) -> (i32, i32, i32) {
    %c0_i32 = arith.constant 0 : i32
    %c0_i32_0 = arith.constant 0 : i32
    %c0_i32_1 = arith.constant 0 : i32
    return %c0_i32, %arg0, %c0_i32_0 : i32, i32, i32
  }
  func.func @transform_1(%arg0: i32) -> (i32, i32) {
    %c0_i32 = arith.constant 0 : i32
    %c0_i32_0 = arith.constant 0 : i32
    %c0_i32_1 = arith.constant 0 : i32
    return %c0_i32, %c0_i32_0 : i32, i32
  }
  func.func @transform_2(%arg0: i32) -> (i32, i32, i32) {
    %c0_i32 = arith.constant 0 : i32
    %c0_i32_0 = arith.constant 0 : i32
    %c0_i32_1 = arith.constant 0 : i32
    %c0_i32_2 = arith.constant 0 : i32
    return %c0_i32, %c0_i32_0, %c0_i32_1 : i32, i32, i32
  }
  func.func @transform_3(%arg0: i32) -> (i32, i32) {
    %c0_i32 = arith.constant 0 : i32
    %c0_i32_0 = arith.constant 0 : i32
    %c0_i32_1 = arith.constant 0 : i32
    return %c0_i32, %c0_i32_0 : i32, i32
  }
  func.func @transform_4(%arg0: i32) -> (i32, i32) {
    %c0_i32 = arith.constant 0 : i32
    %c0_i32_0 = arith.constant 0 : i32
    %c0_i32_1 = arith.constant 0 : i32
    return %c0_i32, %c0_i32_0 : i32, i32
  }
  func.func @transform_5(%arg0: i32) -> (i32, i32) {
    %c0_i32 = arith.constant 0 : i32
    %c0_i32_0 = arith.constant 0 : i32
    %c0_i32_1 = arith.constant 0 : i32
    return %c0_i32, %c0_i32_0 : i32, i32
  }
  func.func @transform_6(%arg0: i32) -> (i32, i32) {
    %c0_i32 = arith.constant 0 : i32
    %c0_i32_0 = arith.constant 0 : i32
    return %arg0, %c0_i32 : i32, i32
  }
}

</mosaic_0001>

<llo_original>
// kernel: tile.0
$region0: #{tile.0}
  %s0 = inlined_call_operand.vmem [shape: bf16[12,32], index: 0, kind: input, shape index: {}]
  %s1 = inlined_call_operand.vmem [shape: bf16[1,384], index: 1, kind: output, shape index: {}]
  $region1: #{tile.0} parent=0
    #allocation0 [shape = 'u8[12288]{0}', space=vmem, size = 0x3000, scoped, tag = 'scoped mem for output reshape']
    #allocation1 [shape = 'u8[8192]{0}', space=vmem, size = 0x2000, scoped, tag = 'scoped mem for input reshape']
    %s3 = smul.u32 4, 2
    %s4 = sshllo.u32 0, %s3
    %s5 = scalar_lea.vmem %s0, 4
    %s6 = sshrl.u32 %s4, 1
    %s7 = sor.u32 %s4, %s6
    %s8 = sand.u32 %s7, 85
    %s9 = sshrl.u32 %s8, 1
    %s10 = sor.u32 %s8, %s9
    %s11 = sand.u32 51, %s10
    %s12 = sshrl.u32 %s11, 2
    %s13 = sor.u32 %s11, %s12
    %s14 = sand.u32 15, %s13
    %v15 = vld [vmem:[%s5] sm:%s14]
    %v16 = vunpack.c.l.bf16 %v15
    %v17 = vunpack.c.h.bf16 %v15
    %s18 = scalar_lea.vmem [#allocation1], 8
    %19 = vst [vmem:[%s18] sm:%s4] %v16
    %s20 = sshrl.u32 %s4, 1
    %s21 = sor.u32 %s4, %s20
    %s22 = sand.u32 %s21, 85
    %s23 = sshrl.u32 %s22, 1
    %s24 = sor.u32 %s22, %s23
    %s25 = sand.u32 51, %s24
    %s26 = sshrl.u32 %s25, 2
    %s27 = sor.u32 %s25, %s26
    %s28 = sand.u32 15, %s27
    %v29 = vld [vmem:[%s0] sm:%s28]
    %v30 = vunpack.c.l.bf16 %v29
    %v31 = vunpack.c.h.bf16 %v29
    %32 = vst [vmem:[#allocation1] sm:%s4] %v30
    %v33 = vld [vmem:[#allocation1] ss:$4 sm:$0x7]
    %vm34 = vcmask 261120
    %35 = vst.msk [vmem:[#allocation0] ss:$8 sm:$0x7] %vm34, %v33
    %s36 = scalar_lea.vmem [#allocation1], 3
    %v37 = vld [vmem:[%s36] ss:$4 sm:$0x7]
    %38 = vrot.lane.b32.xlu0 %v37, 96
    %v39 = vpop.permute.xlu0 %38
    %vm40 = vcmask 1048320
    %41 = vst.msk [vmem:[#allocation0] ss:$8 sm:$0x7] %vm40, %v39
    %s42 = scalar_lea.vmem [#allocation1], 2
    %v43 = vld [vmem:[%s42] ss:$4 sm:$0x7]
    %44 = vrot.lane.b32.xlu0 %v43, 64
    %v45 = vpop.permute.xlu0 %44
    %vm46 = vcmask 785920
    %47 = vst.msk [vmem:[#allocation0] ss:$8 sm:$0x7] %vm46, %v45
    %s48 = scalar_lea.vmem [#allocation1], 1
    %v49 = vld [vmem:[%s48] ss:$4 sm:$0x7]
    %50 = vrot.lane.b32.xlu0 %v49, 32
    %v51 = vpop.permute.xlu0 %50
    %vm52 = vcmask 523520
    %53 = vst.msk [vmem:[#allocation0] ss:$8 sm:$0x7] %vm52, %v51
    %s55 = smul.u32 1, 2
    %s56 = sshllo.u32 0, %s55
    %s57 = sshrl.u32 %s55, 1
    %v58 = vld [vmem:[#allocation0] sm:%s56]
    %v59 = vpack.c.bf16 0.0, %v58
    %s60 = sshllo.u32 0, %s57
    %61 = vst [vmem:[%s1] sm:%s60] %v59
    %s62 = scalar_lea.vmem [#allocation0], 8
    %v63 = vld [vmem:[%s62] sm:%s56]
    %v64 = vpack.c.bf16 0.0, %v63
    %s65 = sshllo.u32 0, %s57
    %s66 = scalar_lea.vmem %s1, 1
    %67 = vst [vmem:[%s66] sm:%s65] %v64
    %s68 = scalar_lea.vmem [#allocation0], 16
    %v69 = vld [vmem:[%s68] sm:%s56]
    %v70 = vpack.c.bf16 0.0, %v69
    %s71 = sshllo.u32 0, %s57
    %s72 = smul.addr 1, 2
    %s73 = scalar_lea.vmem %s1, %s72
    %74 = vst [vmem:[%s73] sm:%s71] %v70

// kernel: vanilla_cnn_forward.1
$region0: #{vanilla_cnn_forward.1}
  #allocation0 [shape = 'u32[]', space=smem, size = 0x4, offset = 0x4, fixed_abs, tag = 'smem constant byte address 0x4 - core index']
  #allocation1 [shape = 'u32[144,128]{1,0:T(1,128)}', space=vmem, size = 0x12000, scoped, tag = 'internal scratch']
  %s0 = inlined_call_operand.vmem [shape: bf16[12,16,256], index: 0, kind: input, shape index: {}]
  %s1 = inlined_call_operand.vmem [shape: bf16[256,384], index: 1, kind: input, shape index: {}]
  %s2 = inlined_call_operand.vmem [shape: bf16[5,384,64], index: 2, kind: input, shape index: {}]
  %s3 = inlined_call_operand.vmem [shape: f32[1,64], index: 3, kind: input, shape index: {}]
  %s4 = inlined_call_operand.vmem [shape: bf16[64,256], index: 4, kind: input, shape index: {}]
  %s5 = inlined_call_operand.vmem [shape: f32[1,256], index: 5, kind: input, shape index: {}]
  %s6 = inlined_call_operand.vmem [shape: f32[16,256], index: 6, kind: output, shape index: {}]
  %s7 = sld [smem:[#allocation0]]
  $region34: #{vanilla_cnn_forward.1} parent=0
    _
  %s9 = ssub.s32 1, %s7
  %s10 = scalar_select 0, %s9, %s7
  // Predicated region
  $region2: #{vanilla_cnn_forward.1} parent=0 // pred_check
    _
  $region3: #{vanilla_cnn_forward.1} parent=0 // pred_check_branch
    %12 = sbr.rel (0) target = $region5
  $region4: #{vanilla_cnn_forward.1} parent=0 // pred_region
    _
  $region5: #{vanilla_cnn_forward.1} parent=0 // pred_fallthru
    _
  // Predicated region
  $region6: #{vanilla_cnn_forward.1} parent=0 // pred_check
    _
  $region7: #{vanilla_cnn_forward.1} parent=0 // pred_check_branch
    %14 = sbr.rel (0) target = $region9
  $region8: #{vanilla_cnn_forward.1} parent=0 // pred_region
    _
  $region9: #{vanilla_cnn_forward.1} parent=0 // pred_fallthru
    _
  // Predicated region
  $region10: #{vanilla_cnn_forward.1} parent=0 // pred_check
    _
  $region11: #{vanilla_cnn_forward.1} parent=0 // pred_check_branch
    %16 = sbr.rel (0) target = $region13
  $region12: #{vanilla_cnn_forward.1} parent=0 // pred_region
    _
  $region13: #{vanilla_cnn_forward.1} parent=0 // pred_fallthru
    _
  // Predicated region
  $region14: #{vanilla_cnn_forward.1} parent=0 // pred_check
    _
  $region15: #{vanilla_cnn_forward.1} parent=0 // pred_check_branch
    %18 = sbr.rel (0) target = $region17
  $region16: #{vanilla_cnn_forward.1} parent=0 // pred_region
    _
  $region17: #{vanilla_cnn_forward.1} parent=0 // pred_fallthru
    _
  // Predicated region
  $region18: #{vanilla_cnn_forward.1} parent=0 // pred_check
    _
  $region19: #{vanilla_cnn_forward.1} parent=0 // pred_check_branch
    %20 = sbr.rel (0) target = $region21
  $region20: #{vanilla_cnn_forward.1} parent=0 // pred_region
    _
  $region21: #{vanilla_cnn_forward.1} parent=0 // pred_fallthru
    _
  // Predicated region
  $region22: #{vanilla_cnn_forward.1} parent=0 // pred_check
    _
  $region23: #{vanilla_cnn_forward.1} parent=0 // pred_check_branch
    %22 = sbr.rel (0) target = $region25
  $region24: #{vanilla_cnn_forward.1} parent=0 // pred_region
    _
  $region25: #{vanilla_cnn_forward.1} parent=0 // pred_fallthru
    _
  %v24 = vld [vmem:[%s0] sm:$0xff]
  %v25 = vld [vmem:[%s0 + $0x8] sm:$0xff]
  %v26 = vld [vmem:[%s0 + $0x10] sm:$0xff]
  %v27 = vld [vmem:[%s0 + $0x18] sm:$0xff]
  %v28 = vld [vmem:[%s0 + $0x20] sm:$0xff]
  %v29 = vld [vmem:[%s0 + $0x28] sm:$0xff]
  %v30 = vld [vmem:[%s0 + $0x30] sm:$0xff]
  %v31 = vld [vmem:[%s0 + $0x38] sm:$0xff]
  %v32 = vld [vmem:[%s0 + $0x40] sm:$0xff]
  %v33 = vld [vmem:[%s0 + $0x48] sm:$0xff]
  %v34 = vld [vmem:[%s0 + $0x50] sm:$0xff]
  %v35 = vld [vmem:[%s0 + $0x58] sm:$0xff]
  %v36 = vld [vmem:[%s0 + $0x60] sm:$0xff]
  %v37 = vld [vmem:[%s0 + $0x68] sm:$0xff]
  %v38 = vld [vmem:[%s0 + $0x70] sm:$0xff]
  %v39 = vld [vmem:[%s0 + $0x78] sm:$0xff]
  %v40 = vld [vmem:[%s0 + $0x80] sm:$0xff]
  %v41 = vld [vmem:[%s0 + $0x88] sm:$0xff]
  %v42 = vld [vmem:[%s0 + $0x90] sm:$0xff]
  %v43 = vld [vmem:[%s0 + $0x98] sm:$0xff]
  %v44 = vld [vmem:[%s0 + $0xa0] sm:$0xff]
  %v45 = vld [vmem:[%s0 + $0xa8] sm:$0xff]
  %v46 = vld [vmem:[%s0 + $0xb0] sm:$0xff]
  %v47 = vld [vmem:[%s0 + $0xb8] sm:$0xff]
  %v48 = vld [vmem:[%s1] sm:$0xff]
  %v49 = vld [vmem:[%s1 + $0x8] sm:$0xf]
  %v50 = vld [vmem:[%s1 + $0xc] sm:$0xff]
  %v51 = vld [vmem:[%s1 + $0x14] sm:$0xf]
  %v52 = vld [vmem:[%s1 + $0x18] sm:$0xff]
  %v53 = vld [vmem:[%s1 + $0x20] sm:$0xf]
  %v54 = vld [vmem:[%s1 + $0x24] sm:$0xff]
  %v55 = vld [vmem:[%s1 + $0x2c] sm:$0xf]
  %v56 = vld [vmem:[%s1 + $0x30] sm:$0xff]
  %v57 = vld [vmem:[%s1 + $0x38] sm:$0xf]
  %v58 = vld [vmem:[%s1 + $0x3c] sm:$0xff]
  %v59 = vld [vmem:[%s1 + $0x44] sm:$0xf]
  %v60 = vld [vmem:[%s1 + $0x48] sm:$0xff]
  %v61 = vld [vmem:[%s1 + $0x50] sm:$0xf]
  %v62 = vld [vmem:[%s1 + $0x54] sm:$0xff]
  %v63 = vld [vmem:[%s1 + $0x5c] sm:$0xf]
  %v64 = vld [vmem:[%s1 + $0x60] sm:$0xff]
  %v65 = vld [vmem:[%s1 + $0x68] sm:$0xf]
  %v66 = vld [vmem:[%s1 + $0x6c] sm:$0xff]
  %v67 = vld [vmem:[%s1 + $0x74] sm:$0xf]
  %v68 = vld [vmem:[%s1 + $0x78] sm:$0xff]
  %v69 = vld [vmem:[%s1 + $0x80] sm:$0xf]
  %v70 = vld [vmem:[%s1 + $0x84] sm:$0xff]
  %v71 = vld [vmem:[%s1 + $0x8c] sm:$0xf]
  %v72 = vld [vmem:[%s1 + $0x90] sm:$0xff]
  %v73 = vld [vmem:[%s1 + $0x98] sm:$0xf]
  %v74 = vld [vmem:[%s1 + $0x9c] sm:$0xff]
  %v75 = vld [vmem:[%s1 + $0xa4] sm:$0xf]
  %v76 = vld [vmem:[%s1 + $0xa8] sm:$0xff]
  %v77 = vld [vmem:[%s1 + $0xb0] sm:$0xf]
  %v78 = vld [vmem:[%s1 + $0xb4] sm:$0xff]
  %v79 = vld [vmem:[%s1 + $0xbc] sm:$0xf]
  %v80 = vld [vmem:[%s1 + $0xc0] sm:$0xff]
  %v81 = vld [vmem:[%s1 + $0xc8] sm:$0xf]
  %v82 = vld [vmem:[%s1 + $0xcc] sm:$0xff]
  %v83 = vld [vmem:[%s1 + $0xd4] sm:$0xf]
  %v84 = vld [vmem:[%s1 + $0xd8] sm:$0xff]
  %v85 = vld [vmem:[%s1 + $0xe0] sm:$0xf]
  %v86 = vld [vmem:[%s1 + $0xe4] sm:$0xff]
  %v87 = vld [vmem:[%s1 + $0xec] sm:$0xf]
  %v88 = vld [vmem:[%s1 + $0xf0] sm:$0xff]
  %v89 = vld [vmem:[%s1 + $0xf8] sm:$0xf]
  %v90 = vld [vmem:[%s1 + $0xfc] sm:$0xff]
  %v91 = vld [vmem:[%s1 + $0x104] sm:$0xf]
  %v92 = vld [vmem:[%s1 + $0x108] sm:$0xff]
  %v93 = vld [vmem:[%s1 + $0x110] sm:$0xf]
  %v94 = vld [vmem:[%s1 + $0x114] sm:$0xff]
  %v95 = vld [vmem:[%s1 + $0x11c] sm:$0xf]
  %v96 = vld [vmem:[%s1 + $0x120] sm:$0xff]
  %v97 = vld [vmem:[%s1 + $0x128] sm:$0xf]
  %v98 = vld [vmem:[%s1 + $0x12c] sm:$0xff]
  %v99 = vld [vmem:[%s1 + $0x134] sm:$0xf]
  %v100 = vld [vmem:[%s1 + $0x138] sm:$0xff]
  %v101 = vld [vmem:[%s1 + $0x140] sm:$0xf]
  %v102 = vld [vmem:[%s1 + $0x144] sm:$0xff]
  %v103 = vld [vmem:[%s1 + $0x14c] sm:$0xf]
  %v104 = vld [vmem:[%s1 + $0x150] sm:$0xff]
  %v105 = vld [vmem:[%s1 + $0x158] sm:$0xf]
  %v106 = vld [vmem:[%s1 + $0x15c] sm:$0xff]
  %v107 = vld [vmem:[%s1 + $0x164] sm:$0xf]
  %v108 = vld [vmem:[%s1 + $0x168] sm:$0xff]
  %v109 = vld [vmem:[%s1 + $0x170] sm:$0xf]
  %v110 = vld [vmem:[%s1 + $0x174] sm:$0xff]
  %v111 = vld [vmem:[%s1 + $0x17c] sm:$0xf]
  %v136 = vunpack.c.l.b16 %v24
  %v137 = vunpack.c.h.b16 %v24
  %v138 = vunpack.c.l.b16 %v25
  %v139 = vunpack.c.h.b16 %v25
  %v140 = vunpack.c.l.b16 %v26
  %v141 = vunpack.c.h.b16 %v26
  %v142 = vunpack.c.l.b16 %v27
  %v143 = vunpack.c.h.b16 %v27
  %v144 = vunpack.c.l.b16 %v28
  %v145 = vunpack.c.h.b16 %v28
  %v146 = vunpack.c.l.b16 %v29
  %v147 = vunpack.c.h.b16 %v29
  %v148 = vunpack.c.l.b16 %v30
  %v149 = vunpack.c.h.b16 %v30
  %v150 = vunpack.c.l.b16 %v31
  %v151 = vunpack.c.h.b16 %v31
  %v152 = vunpack.c.l.b16 %v32
  %v153 = vunpack.c.h.b16 %v32
  %v154 = vunpack.c.l.b16 %v33
  %v155 = vunpack.c.h.b16 %v33
  %v156 = vunpack.c.l.b16 %v34
  %v157 = vunpack.c.h.b16 %v34
  %v158 = vunpack.c.l.b16 %v35
  %v159 = vunpack.c.h.b16 %v35
  %v160 = vunpack.c.l.b16 %v36
  %v161 = vunpack.c.h.b16 %v36
  %v162 = vunpack.c.l.b16 %v37
  %v163 = vunpack.c.h.b16 %v37
  %v164 = vunpack.c.l.b16 %v38
  %v165 = vunpack.c.h.b16 %v38
  %v166 = vunpack.c.l.b16 %v39
  %v167 = vunpack.c.h.b16 %v39
  %v168 = vunpack.c.l.b16 %v40
  %v169 = vunpack.c.h.b16 %v40
  %v170 = vunpack.c.l.b16 %v41
  %v171 = vunpack.c.h.b16 %v41
  %v172 = vunpack.c.l.b16 %v42
  %v173 = vunpack.c.h.b16 %v42
  %v174 = vunpack.c.l.b16 %v43
  %v175 = vunpack.c.h.b16 %v43
  %v176 = vunpack.c.l.b16 %v44
  %v177 = vunpack.c.h.b16 %v44
  %v178 = vunpack.c.l.b16 %v45
  %v179 = vunpack.c.h.b16 %v45
  %v180 = vunpack.c.l.b16 %v46
  %v181 = vunpack.c.h.b16 %v46
  %v182 = vunpack.c.l.b16 %v47
  %v183 = vunpack.c.h.b16 %v47
  %v184 = vpack.c.b16 %v138, %v136
  %v185 = vpack.c.b16 %v139, %v137
  %v186 = vpack.c.b16 %v142, %v140
  %v187 = vpack.c.b16 %v143, %v141
  %v188 = vpack.c.b16 %v146, %v144
  %v189 = vpack.c.b16 %v147, %v145
  %v190 = vpack.c.b16 %v150, %v148
  %v191 = vpack.c.b16 %v151, %v149
  %v192 = vpack.c.b16 %v154, %v152
  %v193 = vpack.c.b16 %v155, %v153
  %v194 = vpack.c.b16 %v158, %v156
  %v195 = vpack.c.b16 %v159, %v157
  %v196 = vpack.c.b16 %v162, %v160
  %v197 = vpack.c.b16 %v163, %v161
  %v198 = vpack.c.b16 %v166, %v164
  %v199 = vpack.c.b16 %v167, %v165
  %v200 = vpack.c.b16 %v170, %v168
  %v201 = vpack.c.b16 %v171, %v169
  %v202 = vpack.c.b16 %v174, %v172
  %v203 = vpack.c.b16 %v175, %v173
  %v204 = vpack.c.b16 %v178, %v176
  %v205 = vpack.c.b16 %v179, %v177
  %v206 = vpack.c.b16 %v182, %v180
  %v207 = vpack.c.b16 %v183, %v181
  %v296 = vunpack.c.l.b16 %v48
  %v297 = vunpack.c.h.b16 %v48
  %v298 = vunpack.c.l.b16 %v49
  %v299 = vunpack.c.l.b16 %v50
  %v300 = vunpack.c.h.b16 %v50
  %v301 = vunpack.c.l.b16 %v51
  %v302 = vunpack.c.l.b16 %v52
  %v303 = vunpack.c.h.b16 %v52
  %v304 = vunpack.c.l.b16 %v53
  %v305 = vunpack.c.l.b16 %v54
  %v306 = vunpack.c.h.b16 %v54
  %v307 = vunpack.c.l.b16 %v55
  %v308 = vunpack.c.l.b16 %v56
  %v309 = vunpack.c.h.b16 %v56
  %v310 = vunpack.c.l.b16 %v57
  %v311 = vunpack.c.l.b16 %v58
  %v312 = vunpack.c.h.b16 %v58
  %v313 = vunpack.c.l.b16 %v59
  %v314 = vunpack.c.l.b16 %v60
  %v315 = vunpack.c.h.b16 %v60
  %v316 = vunpack.c.l.b16 %v61
  %v317 = vunpack.c.l.b16 %v62
  %v318 = vunpack.c.h.b16 %v62
  %v319 = vunpack.c.l.b16 %v63
  %v320 = vunpack.c.l.b16 %v64
  %v321 = vunpack.c.h.b16 %v64
  %v322 = vunpack.c.l.b16 %v65
  %v323 = vunpack.c.l.b16 %v66
  %v324 = vunpack.c.h.b16 %v66
  %v325 = vunpack.c.l.b16 %v67
  %v326 = vunpack.c.l.b16 %v68
  %v327 = vunpack.c.h.b16 %v68
  %v328 = vunpack.c.l.b16 %v69
  %v329 = vunpack.c.l.b16 %v70
  %v330 = vunpack.c.h.b16 %v70
  %v331 = vunpack.c.l.b16 %v71
  %v332 = vunpack.c.l.b16 %v72
  %v333 = vunpack.c.h.b16 %v72
  %v334 = vunpack.c.l.b16 %v73
  %v335 = vunpack.c.l.b16 %v74
  %v336 = vunpack.c.h.b16 %v74
  %v337 = vunpack.c.l.b16 %v75
  %v338 = vunpack.c.l.b16 %v76
  %v339 = vunpack.c.h.b16 %v76
  %v340 = vunpack.c.l.b16 %v77
  %v341 = vunpack.c.l.b16 %v78
  %v342 = vunpack.c.h.b16 %v78
  %v343 = vunpack.c.l.b16 %v79
  %v344 = vunpack.c.l.b16 %v80
  %v345 = vunpack.c.h.b16 %v80
  %v346 = vunpack.c.l.b16 %v81
  %v347 = vunpack.c.l.b16 %v82
  %v348 = vunpack.c.h.b16 %v82
  %v349 = vunpack.c.l.b16 %v83
  %v350 = vunpack.c.l.b16 %v84
  %v351 = vunpack.c.h.b16 %v84
  %v352 = vunpack.c.l.b16 %v85
  %v353 = vunpack.c.l.b16 %v86
  %v354 = vunpack.c.h.b16 %v86
  %v355 = vunpack.c.l.b16 %v87
  %v356 = vunpack.c.l.b16 %v88
  %v357 = vunpack.c.h.b16 %v88
  %v358 = vunpack.c.l.b16 %v89
  %v359 = vunpack.c.l.b16 %v90
  %v360 = vunpack.c.h.b16 %v90
  %v361 = vunpack.c.l.b16 %v91
  %v362 = vunpack.c.l.b16 %v92
  %v363 = vunpack.c.h.b16 %v92
  %v364 = vunpack.c.l.b16 %v93
  %v365 = vunpack.c.l.b16 %v94
  %v366 = vunpack.c.h.b16 %v94
  %v367 = vunpack.c.l.b16 %v95
  %v368 = vunpack.c.l.b16 %v96
  %v369 = vunpack.c.h.b16 %v96
  %v370 = vunpack.c.l.b16 %v97
  %v371 = vunpack.c.l.b16 %v98
  %v372 = vunpack.c.h.b16 %v98
  %v373 = vunpack.c.l.b16 %v99
  %v374 = vunpack.c.l.b16 %v100
  %v375 = vunpack.c.h.b16 %v100
  %v376 = vunpack.c.l.b16 %v101
  %v377 = vunpack.c.l.b16 %v102
  %v378 = vunpack.c.h.b16 %v102
  %v379 = vunpack.c.l.b16 %v103
  %v380 = vunpack.c.l.b16 %v104
  %v381 = vunpack.c.h.b16 %v104
  %v382 = vunpack.c.l.b16 %v105
  %v383 = vunpack.c.l.b16 %v106
  %v384 = vunpack.c.h.b16 %v106
  %v385 = vunpack.c.l.b16 %v107
  %v386 = vunpack.c.l.b16 %v108
  %v387 = vunpack.c.h.b16 %v108
  %v388 = vunpack.c.l.b16 %v109
  %v389 = vunpack.c.l.b16 %v110
  %v390 = vunpack.c.h.b16 %v110
  %v391 = vunpack.c.l.b16 %v111
  %v392 = vpack.c.b16 %v299, %v296
  %v393 = vpack.c.b16 %v300, %v297
  %v394 = vpack.c.b16 %v301, %v298
  %v395 = vpack.c.b16 %v305, %v302
  %v396 = vpack.c.b16 %v306, %v303
  %v397 = vpack.c.b16 %v307, %v304
  %v398 = vpack.c.b16 %v311, %v308
  %v399 = vpack.c.b16 %v312, %v309
  %v400 = vpack.c.b16 %v313, %v310
  %v401 = vpack.c.b16 %v317, %v314
  %v402 = vpack.c.b16 %v318, %v315
  %v403 = vpack.c.b16 %v319, %v316
  %v404 = vpack.c.b16 %v323, %v320
  %v405 = vpack.c.b16 %v324, %v321
  %v406 = vpack.c.b16 %v325, %v322
  %v407 = vpack.c.b16 %v329, %v326
  %v408 = vpack.c.b16 %v330, %v327
  %v409 = vpack.c.b16 %v331, %v328
  %v410 = vpack.c.b16 %v335, %v332
  %v411 = vpack.c.b16 %v336, %v333
  %v412 = vpack.c.b16 %v337, %v334
  %v413 = vpack.c.b16 %v341, %v338
  %v414 = vpack.c.b16 %v342, %v339
  %v415 = vpack.c.b16 %v343, %v340
  %v416 = vpack.c.b16 %v347, %v344
  %v417 = vpack.c.b16 %v348, %v345
  %v418 = vpack.c.b16 %v349, %v346
  %v419 = vpack.c.b16 %v353, %v350
  %v420 = vpack.c.b16 %v354, %v351
  %v421 = vpack.c.b16 %v355, %v352
  %v422 = vpack.c.b16 %v359, %v356
  %v423 = vpack.c.b16 %v360, %v357
  %v424 = vpack.c.b16 %v361, %v358
  %v425 = vpack.c.b16 %v365, %v362
  %v426 = vpack.c.b16 %v366, %v363
  %v427 = vpack.c.b16 %v367, %v364
  %v428 = vpack.c.b16 %v371, %v368
  %v429 = vpack.c.b16 %v372, %v369
  %v430 = vpack.c.b16 %v373, %v370
  %v431 = vpack.c.b16 %v377, %v374
  %v432 = vpack.c.b16 %v378, %v375
  %v433 = vpack.c.b16 %v379, %v376
  %v434 = vpack.c.b16 %v383, %v380
  %v435 = vpack.c.b16 %v384, %v381
  %v436 = vpack.c.b16 %v385, %v382
  %v437 = vpack.c.b16 %v389, %v386
  %v438 = vpack.c.b16 %v390, %v387
  %v439 = vpack.c.b16 %v391, %v388
  %488 = vmatprep.subr.bf16.mxu0 %v393
  %489 = vmatpush1.bf16.msra.mxu0 %v392
  %490 = vmatprep.subr.bf16.mxu0 %v396
  %491 = vmatpush1.bf16.msra.mxu0 %v395
  %492 = vmatprep.subr.bf16.mxu0 %v399
  %493 = vmatpush1.bf16.msra.mxu0 %v398
  %494 = vmatprep.subr.bf16.mxu0 %v402
  %495 = vmatpush1.bf16.msra.mxu0 %v401
  %496 = vmatprep.subr.bf16.mxu0 %v405
  %497 = vmatpush1.bf16.msra.mxu0 %v404
  %498 = vmatprep.subr.bf16.mxu0 %v408
  %499 = vmatpush1.bf16.msra.mxu0 %v407
  %500 = vmatprep.subr.bf16.mxu0 %v411
  %501 = vmatpush1.bf16.msra.mxu0 %v410
  %502 = vmatprep.subr.bf16.mxu0 %v414
  %503 = vmatpush1.bf16.msra.mxu0 %v413
  %504 = vmatprep.subr.bf16.mxu0 %v417
  %505 = vmatpush1.bf16.msra.mxu0 %v416
  %506 = vmatprep.subr.bf16.mxu0 %v420
  %507 = vmatpush1.bf16.msra.mxu0 %v419
  %508 = vmatprep.subr.bf16.mxu0 %v423
  %509 = vmatpush1.bf16.msra.mxu0 %v422
  %510 = vmatprep.subr.bf16.mxu0 %v426
  %511 = vmatpush1.bf16.msra.mxu0 %v425
  %512 = vmatprep.subr.bf16.mxu0 %v429
  %513 = vmatpush1.bf16.msra.mxu0 %v428
  %514 = vmatprep.subr.bf16.mxu0 %v432
  %515 = vmatpush1.bf16.msra.mxu0 %v431
  %516 = vmatprep.subr.bf16.mxu0 %v435
  %517 = vmatpush1.bf16.msra.mxu0 %v434
  %518 = vmatprep.subr.bf16.mxu0 %v438
  %519 = vmatpush1.bf16.msra.mxu0 %v437
  %520 = vmatprep.mubr.bf16.mxu0 %v185
  %521 = vmatmul.mubr.bf16.gmra.mrb[0].mxu0 %v184
  %v522 = vpop.f32.mrb[0].mxu0
  %v523 = vadd.f32 0.0, %v522
  %v524 = vpop.f32.mrb[0].mxu0
  %v525 = vadd.f32 0.0, %v524
  %v526 = vpop.f32.mrb[0].mxu0
  %v527 = vadd.f32 0.0, %v526
  %v528 = vpop.f32.mrb[0].mxu0
  %v529 = vadd.f32 0.0, %v528
  %530 = vmatprep.mubr.bf16.mxu0 %v187
  %531 = vmatmul.mubr.bf16.gmra.mrb[0].mxu0 %v186
  %v532 = vpop.f32.mrb[0].mxu0
  %v533 = vadd.f32 0.0, %v532
  %v534 = vpop.f32.mrb[0].mxu0
  %v535 = vadd.f32 0.0, %v534
  %v536 = vpop.f32.mrb[0].mxu0
  %v537 = vadd.f32 0.0, %v536
  %v538 = vpop.f32.mrb[0].mxu0
  %v539 = vadd.f32 0.0, %v538
  %540 = vmatprep.mubr.bf16.mxu0 %v189
  %541 = vmatmul.mubr.bf16.gmra.mrb[0].mxu0 %v188
  %v542 = vpop.f32.mrb[0].mxu0
  %v543 = vadd.f32 0.0, %v542
  %v544 = vpop.f32.mrb[0].mxu0
  %v545 = vadd.f32 0.0, %v544
  %v546 = vpop.f32.mrb[0].mxu0
  %v547 = vadd.f32 0.0, %v546
  %v548 = vpop.f32.mrb[0].mxu0
  %v549 = vadd.f32 0.0, %v548
  %550 = vmatprep.mubr.bf16.mxu0 %v191
  %551 = vmatmul.mubr.bf16.gmra.mrb[0].mxu0 %v190
  %v552 = vpop.f32.mrb[0].mxu0
  %v553 = vadd.f32 0.0, %v552
  %v554 = vpop.f32.mrb[0].mxu0
  %v555 = vadd.f32 0.0, %v554
  %v556 = vpop.f32.mrb[0].mxu0
  %v557 = vadd.f32 0.0, %v556
  %v558 = vpop.f32.mrb[0].mxu0
  %v559 = vadd.f32 0.0, %v558
  %560 = vmatprep.mubr.bf16.mxu0 %v193
  %561 = vmatmul.mubr.bf16.gmra.mrb[0].mxu0 %v192
  %v562 = vpop.f32.mrb[0].mxu0
  %v563 = vadd.f32 0.0, %v562
  %v564 = vpop.f32.mrb[0].mxu0
  %v565 = vadd.f32 0.0, %v564
  %v566 = vpop.f32.mrb[0].mxu0
  %v567 = vadd.f32 0.0, %v566
  %v568 = vpop.f32.mrb[0].mxu0
  %v569 = vadd.f32 0.0, %v568
  %570 = vmatprep.mubr.bf16.mxu0 %v195
  %571 = vmatmul.mubr.bf16.gmra.mrb[0].mxu0 %v194
  %v572 = vpop.f32.mrb[0].mxu0
  %v573 = vadd.f32 0.0, %v572
  %v574 = vpop.f32.mrb[0].mxu0
  %v575 = vadd.f32 0.0, %v574
  %v576 = vpop.f32.mrb[0].mxu0
  %v577 = vadd.f32 0.0, %v576
  %v578 = vpop.f32.mrb[0].mxu0
  %v579 = vadd.f32 0.0, %v578
  %580 = vmatprep.mubr.bf16.mxu0 %v197
  %581 = vmatmul.mubr.bf16.gmra.mrb[0].mxu0 %v196
  %v582 = vpop.f32.mrb[0].mxu0
  %v583 = vadd.f32 0.0, %v582
  %v584 = vpop.f32.mrb[0].mxu0
  %v585 = vadd.f32 0.0, %v584
  %v586 = vpop.f32.mrb[0].mxu0
  %v587 = vadd.f32 0.0, %v586
  %v588 = vpop.f32.mrb[0].mxu0
  %v589 = vadd.f32 0.0, %v588
  %590 = vmatprep.mubr.bf16.mxu0 %v199
  %591 = vmatmul.mubr.bf16.gmra.mrb[0].mxu0 %v198
  %v592 = vpop.f32.mrb[0].mxu0
  %v593 = vadd.f32 0.0, %v592
  %v594 = vpop.f32.mrb[0].mxu0
  %v595 = vadd.f32 0.0, %v594
  %v596 = vpop.f32.mrb[0].mxu0
  %v597 = vadd.f32 0.0, %v596
  %v598 = vpop.f32.mrb[0].mxu0
  %v599 = vadd.f32 0.0, %v598
  %600 = vmatprep.mubr.bf16.mxu0 %v201
  %601 = vmatmul.mubr.bf16.gmra.mrb[0].mxu0 %v200
  %v602 = vpop.f32.mrb[0].mxu0
  %v603 = vadd.f32 0.0, %v602
  %v604 = vpop.f32.mrb[0].mxu0
  %v605 = vadd.f32 0.0, %v604
  %v606 = vpop.f32.mrb[0].mxu0
  %v607 = vadd.f32 0.0, %v606
  %v608 = vpop.f32.mrb[0].mxu0
  %v609 = vadd.f32 0.0, %v608
  %610 = vmatprep.mubr.bf16.mxu0 %v203
  %611 = vmatmul.mubr.bf16.gmra.mrb[0].mxu0 %v202
  %v612 = vpop.f32.mrb[0].mxu0
  %v613 = vadd.f32 0.0, %v612
  %v614 = vpop.f32.mrb[0].mxu0
  %v615 = vadd.f32 0.0, %v614
  %v616 = vpop.f32.mrb[0].mxu0
  %v617 = vadd.f32 0.0, %v616
  %v618 = vpop.f32.mrb[0].mxu0
  %v619 = vadd.f32 0.0, %v618
  %620 = vmatprep.mubr.bf16.mxu0 %v205
  %621 = vmatmul.mubr.bf16.gmra.mrb[0].mxu0 %v204
  %v622 = vpop.f32.mrb[0].mxu0
  %v623 = vadd.f32 0.0, %v622
  %v624 = vpop.f32.mrb[0].mxu0
  %v625 = vadd.f32 0.0, %v624
  %v626 = vpop.f32.mrb[0].mxu0
  %v627 = vadd.f32 0.0, %v626
  %v628 = vpop.f32.mrb[0].mxu0
  %v629 = vadd.f32 0.0, %v628
  %630 = vmatprep.mubr.bf16.mxu0 %v207
  %631 = vmatmul.mubr.bf16.gmra.mrb[0].mxu0 %v206
  %v632 = vpop.f32.mrb[0].mxu0
  %v633 = vadd.f32 0.0, %v632
  %v634 = vpop.f32.mrb[0].mxu0
  %v635 = vadd.f32 0.0, %v634
  %v636 = vpop.f32.mrb[0].mxu0
  %v637 = vadd.f32 0.0, %v636
  %v638 = vpop.f32.mrb[0].mxu0
  %v639 = vadd.f32 0.0, %v638
  %640 = vdwg.mxu0
  %641 = vmatprep.subr.bf16.mxu0 0
  %642 = vmatpush1.bf16.msra.mxu0 %v394
  %643 = vmatprep.subr.bf16.mxu0 0
  %644 = vmatpush1.bf16.msra.mxu0 %v397
  %645 = vmatprep.subr.bf16.mxu0 0
  %646 = vmatpush1.bf16.msra.mxu0 %v400
  %647 = vmatprep.subr.bf16.mxu0 0
  %648 = vmatpush1.bf16.msra.mxu0 %v403
  %649 = vmatprep.subr.bf16.mxu0 0
  %650 = vmatpush1.bf16.msra.mxu0 %v406
  %651 = vmatprep.subr.bf16.mxu0 0
  %652 = vmatpush1.bf16.msra.mxu0 %v409
  %653 = vmatprep.subr.bf16.mxu0 0
  %654 = vmatpush1.bf16.msra.mxu0 %v412
  %655 = vmatprep.subr.bf16.mxu0 0
  %656 = vmatpush1.bf16.msra.mxu0 %v415
  %657 = vmatprep.subr.bf16.mxu0 0
  %658 = vmatpush1.bf16.msra.mxu0 %v418
  %659 = vmatprep.subr.bf16.mxu0 0
  %660 = vmatpush1.bf16.msra.mxu0 %v421
  %661 = vmatprep.subr.bf16.mxu0 0
  %662 = vmatpush1.bf16.msra.mxu0 %v424
  %663 = vmatprep.subr.bf16.mxu0 0
  %664 = vmatpush1.bf16.msra.mxu0 %v427
  %665 = vmatprep.subr.bf16.mxu0 0
  %666 = vmatpush1.bf16.msra.mxu0 %v430
  %667 = vmatprep.subr.bf16.mxu0 0
  %668 = vmatpush1.bf16.msra.mxu0 %v433
  %669 = vmatprep.subr.bf16.mxu0 0
  %670 = vmatpush1.bf16.msra.mxu0 %v436
  %671 = vmatprep.subr.bf16.mxu0 0
  %672 = vmatpush1.bf16.msra.mxu0 %v439
  %673 = vmatprep.mubr.bf16.mxu0 %v185
  %674 = vmatmul.mubr.bf16.gmra.mrb[0].mxu0 %v184
  %v675 = vpop.f32.mrb[0].mxu0
  %v676 = vadd.f32 0.0, %v675
  %v677 = vpop.f32.mrb[0].mxu0
  %v678 = vpop.f32.mrb[0].mxu0
  %v679 = vadd.f32 0.0, %v678
  %v680 = vpop.f32.mrb[0].mxu0
  %681 = vmatprep.mubr.bf16.mxu0 %v187
  %682 = vmatmul.mubr.bf16.gmra.mrb[0].mxu0 %v186
  %v683 = vpop.f32.mrb[0].mxu0
  %v684 = vadd.f32 0.0, %v683
  %v685 = vpop.f32.mrb[0].mxu0
  %v686 = vpop.f32.mrb[0].mxu0
  %v687 = vadd.f32 0.0, %v686
  %v688 = vpop.f32.mrb[0].mxu0
  %689 = vmatprep.mubr.bf16.mxu0 %v189
  %690 = vmatmul.mubr.bf16.gmra.mrb[0].mxu0 %v188
  %v691 = vpop.f32.mrb[0].mxu0
  %v692 = vadd.f32 0.0, %v691
  %v693 = vpop.f32.mrb[0].mxu0
  %v694 = vpop.f32.mrb[0].mxu0
  %v695 = vadd.f32 0.0, %v694
  %v696 = vpop.f32.mrb[0].mxu0
  %697 = vmatprep.mubr.bf16.mxu0 %v191
  %698 = vmatmul.mubr.bf16.gmra.mrb[0].mxu0 %v190
  %v699 = vpop.f32.mrb[0].mxu0
  %v700 = vadd.f32 0.0, %v699
  %v701 = vpop.f32.mrb[0].mxu0
  %v702 = vpop.f32.mrb[0].mxu0
  %v703 = vadd.f32 0.0, %v702
  %v704 = vpop.f32.mrb[0].mxu0
  %705 = vmatprep.mubr.bf16.mxu0 %v193
  %706 = vmatmul.mubr.bf16.gmra.mrb[0].mxu0 %v192
  %v707 = vpop.f32.mrb[0].mxu0
  %v708 = vadd.f32 0.0, %v707
  %v709 = vpop.f32.mrb[0].mxu0
  %v710 = vpop.f32.mrb[0].mxu0
  %v711 = vadd.f32 0.0, %v710
  %v712 = vpop.f32.mrb[0].mxu0
  %713 = vmatprep.mubr.bf16.mxu0 %v195
  %714 = vmatmul.mubr.bf16.gmra.mrb[0].mxu0 %v194
  %v715 = vpop.f32.mrb[0].mxu0
  %v716 = vadd.f32 0.0, %v715
  %v717 = vpop.f32.mrb[0].mxu0
  %v718 = vpop.f32.mrb[0].mxu0
  %v719 = vadd.f32 0.0, %v718
  %v720 = vpop.f32.mrb[0].mxu0
  %721 = vmatprep.mubr.bf16.mxu0 %v197
  %722 = vmatmul.mubr.bf16.gmra.mrb[0].mxu0 %v196
  %v723 = vpop.f32.mrb[0].mxu0
  %v724 = vadd.f32 0.0, %v723
  %v725 = vpop.f32.mrb[0].mxu0
  %v726 = vpop.f32.mrb[0].mxu0
  %v727 = vadd.f32 0.0, %v726
  %v728 = vpop.f32.mrb[0].mxu0
  %729 = vmatprep.mubr.bf16.mxu0 %v199
  %730 = vmatmul.mubr.bf16.gmra.mrb[0].mxu0 %v198
  %v731 = vpop.f32.mrb[0].mxu0
  %v732 = vadd.f32 0.0, %v731
  %v733 = vpop.f32.mrb[0].mxu0
  %v734 = vpop.f32.mrb[0].mxu0
  %v735 = vadd.f32 0.0, %v734
  %v736 = vpop.f32.mrb[0].mxu0
  %737 = vmatprep.mubr.bf16.mxu0 %v201
  %738 = vmatmul.mubr.bf16.gmra.mrb[0].mxu0 %v200
  %v739 = vpop.f32.mrb[0].mxu0
  %v740 = vadd.f32 0.0, %v739
  %v741 = vpop.f32.mrb[0].mxu0
  %v742 = vpop.f32.mrb[0].mxu0
  %v743 = vadd.f32 0.0, %v742
  %v744 = vpop.f32.mrb[0].mxu0
  %745 = vmatprep.mubr.bf16.mxu0 %v203
  %746 = vmatmul.mubr.bf16.gmra.mrb[0].mxu0 %v202
  %v747 = vpop.f32.mrb[0].mxu0
  %v748 = vadd.f32 0.0, %v747
  %v749 = vpop.f32.mrb[0].mxu0
  %v750 = vpop.f32.mrb[0].mxu0
  %v751 = vadd.f32 0.0, %v750
  %v752 = vpop.f32.mrb[0].mxu0
  %753 = vmatprep.mubr.bf16.mxu0 %v205
  %754 = vmatmul.mubr.bf16.gmra.mrb[0].mxu0 %v204
  %v755 = vpop.f32.mrb[0].mxu0
  %v756 = vadd.f32 0.0, %v755
  %v757 = vpop.f32.mrb[0].mxu0
  %v758 = vpop.f32.mrb[0].mxu0
  %v759 = vadd.f32 0.0, %v758
  %v760 = vpop.f32.mrb[0].mxu0
  %761 = vmatprep.mubr.bf16.mxu0 %v207
  %762 = vmatmul.mubr.bf16.gmra.mrb[0].mxu0 %v206
  %v763 = vpop.f32.mrb[0].mxu0
  %v764 = vadd.f32 0.0, %v763
  %v765 = vpop.f32.mrb[0].mxu0
  %v766 = vpop.f32.mrb[0].mxu0
  %v767 = vadd.f32 0.0, %v766
  %v768 = vpop.f32.mrb[0].mxu0
  %769 = vdwg.mxu0
  %v770 = vpack.c.bf16 %v527, %v523
  %v771 = vpack.c.bf16 %v529, %v525
  %v772 = vpack.c.bf16 %v679, %v676
  %v773 = vpack.c.bf16 %v537, %v533
  %v774 = vpack.c.bf16 %v539, %v535
  %v775 = vpack.c.bf16 %v687, %v684
  %v776 = vpack.c.bf16 %v547, %v543
  %v777 = vpack.c.bf16 %v549, %v545
  %v778 = vpack.c.bf16 %v695, %v692
  %v779 = vpack.c.bf16 %v557, %v553
  %v780 = vpack.c.bf16 %v559, %v555
  %v781 = vpack.c.bf16 %v703, %v700
  %v782 = vpack.c.bf16 %v567, %v563
  %v783 = vpack.c.bf16 %v569, %v565
  %v784 = vpack.c.bf16 %v711, %v708
  %v785 = vpack.c.bf16 %v577, %v573
  %v786 = vpack.c.bf16 %v579, %v575
  %v787 = vpack.c.bf16 %v719, %v716
  %v788 = vpack.c.bf16 %v587, %v583
  %v789 = vpack.c.bf16 %v589, %v585
  %v790 = vpack.c.bf16 %v727, %v724
  %v791 = vpack.c.bf16 %v597, %v593
  %v792 = vpack.c.bf16 %v599, %v595
  %v793 = vpack.c.bf16 %v735, %v732
  %v794 = vpack.c.bf16 %v607, %v603
  %v795 = vpack.c.bf16 %v609, %v605
  %v796 = vpack.c.bf16 %v743, %v740
  %v797 = vpack.c.bf16 %v617, %v613
  %v798 = vpack.c.bf16 %v619, %v615
  %v799 = vpack.c.bf16 %v751, %v748
  %v800 = vpack.c.bf16 %v627, %v623
  %v801 = vpack.c.bf16 %v629, %v625
  %v802 = vpack.c.bf16 %v759, %v756
  %v803 = vpack.c.bf16 %v637, %v633
  %v804 = vpack.c.bf16 %v639, %v635
  %v805 = vpack.c.bf16 %v767, %v764
  %v806 = vmax.bf16 %v770, 0
  %v807 = vmax.bf16 %v771, 0
  %v808 = vmax.bf16 %v772, 0
  %v809 = vmax.bf16 %v773, 0
  %v810 = vmax.bf16 %v774, 0
  %v811 = vmax.bf16 %v775, 0
  %v812 = vmax.bf16 %v776, 0
  %v813 = vmax.bf16 %v777, 0
  %v814 = vmax.bf16 %v778, 0
  %v815 = vmax.bf16 %v779, 0
  %v816 = vmax.bf16 %v780, 0
  %v817 = vmax.bf16 %v781, 0
  %v818 = vmax.bf16 %v782, 0
  %v819 = vmax.bf16 %v783, 0
  %v820 = vmax.bf16 %v784, 0
  %v821 = vmax.bf16 %v785, 0
  %v822 = vmax.bf16 %v786, 0
  %v823 = vmax.bf16 %v787, 0
  %v824 = vmax.bf16 %v788, 0
  %v825 = vmax.bf16 %v789, 0
  %v826 = vmax.bf16 %v790, 0
  %v827 = vmax.bf16 %v791, 0
  %v828 = vmax.bf16 %v792, 0
  %v829 = vmax.bf16 %v793, 0
  %v830 = vmax.bf16 %v794, 0
  %v831 = vmax.bf16 %v795, 0
  %v832 = vmax.bf16 %v796, 0
  %v833 = vmax.bf16 %v797, 0
  %v834 = vmax.bf16 %v798, 0
  %v835 = vmax.bf16 %v799, 0
  %v836 = vmax.bf16 %v800, 0
  %v837 = vmax.bf16 %v801, 0
  %v838 = vmax.bf16 %v802, 0
  %v839 = vmax.bf16 %v803, 0
  %v840 = vmax.bf16 %v804, 0
  %v841 = vmax.bf16 %v805, 0
  %v842 = vadd.bf16 %v806, %v809
  %v843 = vadd.bf16 %v807, %v810
  %v844 = vadd.bf16 %v808, %v811
  %v845 = vadd.bf16 %v842, %v812
  %v846 = vadd.bf16 %v843, %v813
  %v847 = vadd.bf16 %v844, %v814
  %v848 = vld [vmem:[%s2] sm:$0xf]
  %v849 = vld [vmem:[%s2 + $0x4] sm:$0xf]
  %v850 = vld [vmem:[%s2 + $0x8] sm:$0xf]
  %v851 = vld [vmem:[%s2 + $0xc] sm:$0xf]
  %v852 = vld [vmem:[%s2 + $0x10] sm:$0xf]
  %v853 = vld [vmem:[%s2 + $0x14] sm:$0xf]
  %v854 = vld [vmem:[%s2 + $0x18] sm:$0xf]
  %v855 = vld [vmem:[%s2 + $0x1c] sm:$0xf]
  %v856 = vld [vmem:[%s2 + $0x20] sm:$0xf]
  %v857 = vld [vmem:[%s2 + $0x24] sm:$0xf]
  %v858 = vld [vmem:[%s2 + $0x28] sm:$0xf]
  %v859 = vld [vmem:[%s2 + $0x2c] sm:$0xf]
  %v860 = vld [vmem:[%s2 + $0x30] sm:$0xf]
  %v861 = vld [vmem:[%s2 + $0x34] sm:$0xf]
  %v862 = vld [vmem:[%s2 + $0x38] sm:$0xf]
  %v863 = vld [vmem:[%s2 + $0x3c] sm:$0xf]
  %v864 = vld [vmem:[%s2 + $0x40] sm:$0xf]
  %v865 = vld [vmem:[%s2 + $0x44] sm:$0xf]
  %v866 = vld [vmem:[%s2 + $0x48] sm:$0xf]
  %v867 = vld [vmem:[%s2 + $0x4c] sm:$0xf]
  %v868 = vld [vmem:[%s2 + $0x50] sm:$0xf]
  %v869 = vld [vmem:[%s2 + $0x54] sm:$0xf]
  %v870 = vld [vmem:[%s2 + $0x58] sm:$0xf]
  %v871 = vld [vmem:[%s2 + $0x5c] sm:$0xf]
  %v872 = vld [vmem:[%s2 + $0x60] sm:$0xf]
  %v873 = vld [vmem:[%s2 + $0x64] sm:$0xf]
  %v874 = vld [vmem:[%s2 + $0x68] sm:$0xf]
  %v875 = vld [vmem:[%s2 + $0x6c] sm:$0xf]
  %v876 = vld [vmem:[%s2 + $0x70] sm:$0xf]
  %v877 = vld [vmem:[%s2 + $0x74] sm:$0xf]
  %v878 = vld [vmem:[%s2 + $0x78] sm:$0xf]
  %v879 = vld [vmem:[%s2 + $0x7c] sm:$0xf]
  %v880 = vld [vmem:[%s2 + $0x80] sm:$0xf]
  %v881 = vld [vmem:[%s2 + $0x84] sm:$0xf]
  %v882 = vld [vmem:[%s2 + $0x88] sm:$0xf]
  %v883 = vld [vmem:[%s2 + $0x8c] sm:$0xf]
  %v884 = vld [vmem:[%s2 + $0x90] sm:$0xf]
  %v885 = vld [vmem:[%s2 + $0x94] sm:$0xf]
  %v886 = vld [vmem:[%s2 + $0x98] sm:$0xf]
  %v887 = vld [vmem:[%s2 + $0x9c] sm:$0xf]
  %v888 = vld [vmem:[%s2 + $0xa0] sm:$0xf]
  %v889 = vld [vmem:[%s2 + $0xa4] sm:$0xf]
  %v890 = vld [vmem:[%s2 + $0xa8] sm:$0xf]
  %v891 = vld [vmem:[%s2 + $0xac] sm:$0xf]
  %v892 = vld [vmem:[%s2 + $0xb0] sm:$0xf]
  %v893 = vld [vmem:[%s2 + $0xb4] sm:$0xf]
  %v894 = vld [vmem:[%s2 + $0xb8] sm:$0xf]
  %v895 = vld [vmem:[%s2 + $0xbc] sm:$0xf]
  %v896 = vadd.bf16 %v812, %v815
  %v897 = vadd.bf16 %v813, %v816
  %v898 = vadd.bf16 %v814, %v817
  %v899 = vadd.bf16 %v896, %v818
  %v900 = vadd.bf16 %v897, %v819
  %v901 = vadd.bf16 %v898, %v820
  %s902 = scalar_lea.vmem %s2, 192
  %v903 = vld [vmem:[%s902] sm:$0xf]
  %v904 = vld [vmem:[%s902 + $0x4] sm:$0xf]
  %v905 = vld [vmem:[%s902 + $0x8] sm:$0xf]
  %v906 = vld [vmem:[%s902 + $0xc] sm:$0xf]
  %v907 = vld [vmem:[%s902 + $0x10] sm:$0xf]
  %v908 = vld [vmem:[%s902 + $0x14] sm:$0xf]
  %v909 = vld [vmem:[%s902 + $0x18] sm:$0xf]
  %v910 = vld [vmem:[%s902 + $0x1c] sm:$0xf]
  %v911 = vld [vmem:[%s902 + $0x20] sm:$0xf]
  %v912 = vld [vmem:[%s902 + $0x24] sm:$0xf]
  %v913 = vld [vmem:[%s902 + $0x28] sm:$0xf]
  %v914 = vld [vmem:[%s902 + $0x2c] sm:$0xf]
  %v915 = vld [vmem:[%s902 + $0x30] sm:$0xf]
  %v916 = vld [vmem:[%s902 + $0x34] sm:$0xf]
  %v917 = vld [vmem:[%s902 + $0x38] sm:$0xf]
  %v918 = vld [vmem:[%s902 + $0x3c] sm:$0xf]
  %v919 = vld [vmem:[%s902 + $0x40] sm:$0xf]
  %v920 = vld [vmem:[%s902 + $0x44] sm:$0xf]
  %v921 = vld [vmem:[%s902 + $0x48] sm:$0xf]
  %v922 = vld [vmem:[%s902 + $0x4c] sm:$0xf]
  %v923 = vld [vmem:[%s902 + $0x50] sm:$0xf]
  %v924 = vld [vmem:[%s902 + $0x54] sm:$0xf]
  %v925 = vld [vmem:[%s902 + $0x58] sm:$0xf]
  %v926 = vld [vmem:[%s902 + $0x5c] sm:$0xf]
  %v927 = vld [vmem:[%s902 + $0x60] sm:$0xf]
  %v928 = vld [vmem:[%s902 + $0x64] sm:$0xf]
  %v929 = vld [vmem:[%s902 + $0x68] sm:$0xf]
  %v930 = vld [vmem:[%s902 + $0x6c] sm:$0xf]
  %v931 = vld [vmem:[%s902 + $0x70] sm:$0xf]
  %v932 = vld [vmem:[%s902 + $0x74] sm:$0xf]
  %v933 = vld [vmem:[%s902 + $0x78] sm:$0xf]
  %v934 = vld [vmem:[%s902 + $0x7c] sm:$0xf]
  %v935 = vld [vmem:[%s902 + $0x80] sm:$0xf]
  %v936 = vld [vmem:[%s902 + $0x84] sm:$0xf]
  %v937 = vld [vmem:[%s902 + $0x88] sm:$0xf]
  %v938 = vld [vmem:[%s902 + $0x8c] sm:$0xf]
  %v939 = vld [vmem:[%s902 + $0x90] sm:$0xf]
  %v940 = vld [vmem:[%s902 + $0x94] sm:$0xf]
  %v941 = vld [vmem:[%s902 + $0x98] sm:$0xf]
  %v942 = vld [vmem:[%s902 + $0x9c] sm:$0xf]
  %v943 = vld [vmem:[%s902 + $0xa0] sm:$0xf]
  %v944 = vld [vmem:[%s902 + $0xa4] sm:$0xf]
  %v945 = vld [vmem:[%s902 + $0xa8] sm:$0xf]
  %v946 = vld [vmem:[%s902 + $0xac] sm:$0xf]
  %v947 = vld [vmem:[%s902 + $0xb0] sm:$0xf]
  %v948 = vld [vmem:[%s902 + $0xb4] sm:$0xf]
  %v949 = vld [vmem:[%s902 + $0xb8] sm:$0xf]
  %v950 = vld [vmem:[%s902 + $0xbc] sm:$0xf]
  %v999 = vunpack.c.l.b16 %v903
  %v1000 = vunpack.c.l.b16 %v904
  %v1001 = vunpack.c.l.b16 %v905
  %v1002 = vunpack.c.l.b16 %v906
  %v1003 = vunpack.c.l.b16 %v907
  %v1004 = vunpack.c.l.b16 %v908
  %v1005 = vunpack.c.l.b16 %v909
  %v1006 = vunpack.c.l.b16 %v910
  %v1007 = vunpack.c.l.b16 %v911
  %v1008 = vunpack.c.l.b16 %v912
  %v1009 = vunpack.c.l.b16 %v913
  %v1010 = vunpack.c.l.b16 %v914
  %v1011 = vunpack.c.l.b16 %v915
  %v1012 = vunpack.c.l.b16 %v916
  %v1013 = vunpack.c.l.b16 %v917
  %v1014 = vunpack.c.l.b16 %v918
  %v1015 = vunpack.c.l.b16 %v919
  %v1016 = vunpack.c.l.b16 %v920
  %v1017 = vunpack.c.l.b16 %v921
  %v1018 = vunpack.c.l.b16 %v922
  %v1019 = vunpack.c.l.b16 %v923
  %v1020 = vunpack.c.l.b16 %v924
  %v1021 = vunpack.c.l.b16 %v925
  %v1022 = vunpack.c.l.b16 %v926
  %v1023 = vunpack.c.l.b16 %v927
  %v1024 = vunpack.c.l.b16 %v928
  %v1025 = vunpack.c.l.b16 %v929
  %v1026 = vunpack.c.l.b16 %v930
  %v1027 = vunpack.c.l.b16 %v931
  %v1028 = vunpack.c.l.b16 %v932
  %v1029 = vunpack.c.l.b16 %v933
  %v1030 = vunpack.c.l.b16 %v934
  %v1031 = vunpack.c.l.b16 %v935
  %v1032 = vunpack.c.l.b16 %v936
  %v1033 = vunpack.c.l.b16 %v937
  %v1034 = vunpack.c.l.b16 %v938
  %v1035 = vunpack.c.l.b16 %v939
  %v1036 = vunpack.c.l.b16 %v940
  %v1037 = vunpack.c.l.b16 %v941
  %v1038 = vunpack.c.l.b16 %v942
  %v1039 = vunpack.c.l.b16 %v943
  %v1040 = vunpack.c.l.b16 %v944
  %v1041 = vunpack.c.l.b16 %v945
  %v1042 = vunpack.c.l.b16 %v946
  %v1043 = vunpack.c.l.b16 %v947
  %v1044 = vunpack.c.l.b16 %v948
  %v1045 = vunpack.c.l.b16 %v949
  %v1046 = vunpack.c.l.b16 %v950
  %v1047 = vpack.c.b16 %v1000, %v999
  %v1048 = vpack.c.b16 %v1002, %v1001
  %v1049 = vpack.c.b16 %v1004, %v1003
  %v1050 = vpack.c.b16 %v1006, %v1005
  %v1051 = vpack.c.b16 %v1008, %v1007
  %v1052 = vpack.c.b16 %v1010, %v1009
  %v1053 = vpack.c.b16 %v1012, %v1011
  %v1054 = vpack.c.b16 %v1014, %v1013
  %v1055 = vpack.c.b16 %v1016, %v1015
  %v1056 = vpack.c.b16 %v1018, %v1017
  %v1057 = vpack.c.b16 %v1020, %v1019
  %v1058 = vpack.c.b16 %v1022, %v1021
  %v1059 = vpack.c.b16 %v1024, %v1023
  %v1060 = vpack.c.b16 %v1026, %v1025
  %v1061 = vpack.c.b16 %v1028, %v1027
  %v1062 = vpack.c.b16 %v1030, %v1029
  %v1063 = vpack.c.b16 %v1032, %v1031
  %v1064 = vpack.c.b16 %v1034, %v1033
  %v1065 = vpack.c.b16 %v1036, %v1035
  %v1066 = vpack.c.b16 %v1038, %v1037
  %v1067 = vpack.c.b16 %v1040, %v1039
  %v1068 = vpack.c.b16 %v1042, %v1041
  %v1069 = vpack.c.b16 %v1044, %v1043
  %v1070 = vpack.c.b16 %v1046, %v1045
  %1095 = vmatprep.subr.bf16.mxu0 0
  %1096 = vmatpush1.bf16.msra.mxu0 %v1047
  %1097 = vmatprep.subr.bf16.mxu0 0
  %1098 = vmatpush1.bf16.msra.mxu0 %v1048
  %1099 = vmatprep.subr.bf16.mxu0 0
  %1100 = vmatpush1.bf16.msra.mxu0 %v1049
  %1101 = vmatprep.subr.bf16.mxu0 0
  %1102 = vmatpush1.bf16.msra.mxu0 %v1050
  %1103 = vmatprep.subr.bf16.mxu0 0
  %1104 = vmatpush1.bf16.msra.mxu0 %v1051
  %1105 = vmatprep.subr.bf16.mxu0 0
  %1106 = vmatpush1.bf16.msra.mxu0 %v1052
  %1107 = vmatprep.subr.bf16.mxu0 0
  %1108 = vmatpush1.bf16.msra.mxu0 %v1053
  %1109 = vmatprep.subr.bf16.mxu0 0
  %1110 = vmatpush1.bf16.msra.mxu0 %v1054
  %1111 = vmatprep.subr.bf16.mxu0 0
  %1112 = vmatpush1.bf16.msra.mxu0 %v1055
  %1113 = vmatprep.subr.bf16.mxu0 0
  %1114 = vmatpush1.bf16.msra.mxu0 %v1056
  %1115 = vmatprep.subr.bf16.mxu0 0
  %1116 = vmatpush1.bf16.msra.mxu0 %v1057
  %1117 = vmatprep.subr.bf16.mxu0 0
  %1118 = vmatpush1.bf16.msra.mxu0 %v1058
  %1119 = vmatprep.subr.bf16.mxu0 0
  %1120 = vmatpush1.bf16.msra.mxu0 %v1059
  %1121 = vmatprep.subr.bf16.mxu0 0
  %1122 = vmatpush1.bf16.msra.mxu0 %v1060
  %1123 = vmatprep.subr.bf16.mxu0 0
  %1124 = vmatpush1.bf16.msra.mxu0 %v1061
  %1125 = vmatprep.subr.bf16.mxu0 0
  %1126 = vmatpush1.bf16.msra.mxu0 %v1062
  %1127 = vmatprep.mubr.bf16.mxu0 %v900
  %1128 = vmatmul.mubr.bf16.gmra.mrb[0].mxu0 %v899
  %v1129 = vpop.f32.mrb[0].mxu0
  %v1130 = vadd.f32 0.0, %v1129
  %v1131 = vpop.f32.mrb[0].mxu0
  %v1132 = vpop.f32.mrb[0].mxu0
  %v1133 = vadd.f32 0.0, %v1132
  %v1134 = vpop.f32.mrb[0].mxu0
  %1135 = vdwg.mxu0
  %1136 = vmatprep.subr.bf16.mxu0 0
  %1137 = vmatpush1.bf16.msra.mxu0 %v1063
  %1138 = vmatprep.subr.bf16.mxu0 0
  %1139 = vmatpush1.bf16.msra.mxu0 %v1064
  %1140 = vmatprep.subr.bf16.mxu0 0
  %1141 = vmatpush1.bf16.msra.mxu0 %v1065
  %1142 = vmatprep.subr.bf16.mxu0 0
  %1143 = vmatpush1.bf16.msra.mxu0 %v1066
  %1144 = vmatprep.subr.bf16.mxu0 0
  %1145 = vmatpush1.bf16.msra.mxu0 %v1067
  %1146 = vmatprep.subr.bf16.mxu0 0
  %1147 = vmatpush1.bf16.msra.mxu0 %v1068
  %1148 = vmatprep.subr.bf16.mxu0 0
  %1149 = vmatpush1.bf16.msra.mxu0 %v1069
  %1150 = vmatprep.subr.bf16.mxu0 0
  %1151 = vmatpush1.bf16.msra.mxu0 %v1070
  %1152 = vmatprep.subr.bf16.mxu0 0
  %1153 = vmatpush1.bf16.msra.mxu0 0
  %1154 = vmatprep.subr.bf16.mxu0 0
  %1155 = vmatpush1.bf16.msra.mxu0 0
  %1156 = vmatprep.subr.bf16.mxu0 0
  %1157 = vmatpush1.bf16.msra.mxu0 0
  %1158 = vmatprep.subr.bf16.mxu0 0
  %1159 = vmatpush1.bf16.msra.mxu0 0
  %1160 = vmatprep.subr.bf16.mxu0 0
  %1161 = vmatpush1.bf16.msra.mxu0 0
  %1162 = vmatprep.subr.bf16.mxu0 0
  %1163 = vmatpush1.bf16.msra.mxu0 0
  %1164 = vmatprep.subr.bf16.mxu0 0
  %1165 = vmatpush1.bf16.msra.mxu0 0
  %1166 = vmatprep.subr.bf16.mxu0 0
  %1167 = vmatpush1.bf16.msra.mxu0 0
  %1168 = vmatprep.mubr.bf16.mxu0 0
  %1169 = vmatmul.mubr.bf16.gmra.mrb[0].mxu0 %v901
  %v1170 = vpop.f32.mrb[0].mxu0
  %v1171 = vadd.f32 %v1130, %v1170
  %v1172 = vpop.f32.mrb[0].mxu0
  %v1173 = vpop.f32.mrb[0].mxu0
  %v1174 = vadd.f32 %v1133, %v1173
  %v1175 = vpop.f32.mrb[0].mxu0
  %1176 = vdwg.mxu0
  %v1225 = vunpack.c.l.b16 %v848
  %v1226 = vunpack.c.l.b16 %v849
  %v1227 = vunpack.c.l.b16 %v850
  %v1228 = vunpack.c.l.b16 %v851
  %v1229 = vunpack.c.l.b16 %v852
  %v1230 = vunpack.c.l.b16 %v853
  %v1231 = vunpack.c.l.b16 %v854
  %v1232 = vunpack.c.l.b16 %v855
  %v1233 = vunpack.c.l.b16 %v856
  %v1234 = vunpack.c.l.b16 %v857
  %v1235 = vunpack.c.l.b16 %v858
  %v1236 = vunpack.c.l.b16 %v859
  %v1237 = vunpack.c.l.b16 %v860
  %v1238 = vunpack.c.l.b16 %v861
  %v1239 = vunpack.c.l.b16 %v862
  %v1240 = vunpack.c.l.b16 %v863
  %v1241 = vunpack.c.l.b16 %v864
  %v1242 = vunpack.c.l.b16 %v865
  %v1243 = vunpack.c.l.b16 %v866
  %v1244 = vunpack.c.l.b16 %v867
  %v1245 = vunpack.c.l.b16 %v868
  %v1246 = vunpack.c.l.b16 %v869
  %v1247 = vunpack.c.l.b16 %v870
  %v1248 = vunpack.c.l.b16 %v871
  %v1249 = vunpack.c.l.b16 %v872
  %v1250 = vunpack.c.l.b16 %v873
  %v1251 = vunpack.c.l.b16 %v874
  %v1252 = vunpack.c.l.b16 %v875
  %v1253 = vunpack.c.l.b16 %v876
  %v1254 = vunpack.c.l.b16 %v877
  %v1255 = vunpack.c.l.b16 %v878
  %v1256 = vunpack.c.l.b16 %v879
  %v1257 = vunpack.c.l.b16 %v880
  %v1258 = vunpack.c.l.b16 %v881
  %v1259 = vunpack.c.l.b16 %v882
  %v1260 = vunpack.c.l.b16 %v883
  %v1261 = vunpack.c.l.b16 %v884
  %v1262 = vunpack.c.l.b16 %v885
  %v1263 = vunpack.c.l.b16 %v886
  %v1264 = vunpack.c.l.b16 %v887
  %v1265 = vunpack.c.l.b16 %v888
  %v1266 = vunpack.c.l.b16 %v889
  %v1267 = vunpack.c.l.b16 %v890
  %v1268 = vunpack.c.l.b16 %v891
  %v1269 = vunpack.c.l.b16 %v892
  %v1270 = vunpack.c.l.b16 %v893
  %v1271 = vunpack.c.l.b16 %v894
  %v1272 = vunpack.c.l.b16 %v895
  %v1273 = vpack.c.b16 %v1226, %v1225
  %v1274 = vpack.c.b16 %v1228, %v1227
  %v1275 = vpack.c.b16 %v1230, %v1229
  %v1276 = vpack.c.b16 %v1232, %v1231
  %v1277 = vpack.c.b16 %v1234, %v1233
  %v1278 = vpack.c.b16 %v1236, %v1235
  %v1279 = vpack.c.b16 %v1238, %v1237
  %v1280 = vpack.c.b16 %v1240, %v1239
  %v1281 = vpack.c.b16 %v1242, %v1241
  %v1282 = vpack.c.b16 %v1244, %v1243
  %v1283 = vpack.c.b16 %v1246, %v1245
  %v1284 = vpack.c.b16 %v1248, %v1247
  %v1285 = vpack.c.b16 %v1250, %v1249
  %v1286 = vpack.c.b16 %v1252, %v1251
  %v1287 = vpack.c.b16 %v1254, %v1253
  %v1288 = vpack.c.b16 %v1256, %v1255
  %v1289 = vpack.c.b16 %v1258, %v1257
  %v1290 = vpack.c.b16 %v1260, %v1259
  %v1291 = vpack.c.b16 %v1262, %v1261
  %v1292 = vpack.c.b16 %v1264, %v1263
  %v1293 = vpack.c.b16 %v1266, %v1265
  %v1294 = vpack.c.b16 %v1268, %v1267
  %v1295 = vpack.c.b16 %v1270, %v1269
  %v1296 = vpack.c.b16 %v1272, %v1271
  %1321 = vmatprep.subr.bf16.mxu0 0
  %1322 = vmatpush1.bf16.msra.mxu0 %v1273
  %1323 = vmatprep.subr.bf16.mxu0 0
  %1324 = vmatpush1.bf16.msra.mxu0 %v1274
  %1325 = vmatprep.subr.bf16.mxu0 0
  %1326 = vmatpush1.bf16.msra.mxu0 %v1275
  %1327 = vmatprep.subr.bf16.mxu0 0
  %1328 = vmatpush1.bf16.msra.mxu0 %v1276
  %1329 = vmatprep.subr.bf16.mxu0 0
  %1330 = vmatpush1.bf16.msra.mxu0 %v1277
  %1331 = vmatprep.subr.bf16.mxu0 0
  %1332 = vmatpush1.bf16.msra.mxu0 %v1278
  %1333 = vmatprep.subr.bf16.mxu0 0
  %1334 = vmatpush1.bf16.msra.mxu0 %v1279
  %1335 = vmatprep.subr.bf16.mxu0 0
  %1336 = vmatpush1.bf16.msra.mxu0 %v1280
  %1337 = vmatprep.subr.bf16.mxu0 0
  %1338 = vmatpush1.bf16.msra.mxu0 %v1281
  %1339 = vmatprep.subr.bf16.mxu0 0
  %1340 = vmatpush1.bf16.msra.mxu0 %v1282
  %1341 = vmatprep.subr.bf16.mxu0 0
  %1342 = vmatpush1.bf16.msra.mxu0 %v1283
  %1343 = vmatprep.subr.bf16.mxu0 0
  %1344 = vmatpush1.bf16.msra.mxu0 %v1284
  %1345 = vmatprep.subr.bf16.mxu0 0
  %1346 = vmatpush1.bf16.msra.mxu0 %v1285
  %1347 = vmatprep.subr.bf16.mxu0 0
  %1348 = vmatpush1.bf16.msra.mxu0 %v1286
  %1349 = vmatprep.subr.bf16.mxu0 0
  %1350 = vmatpush1.bf16.msra.mxu0 %v1287
  %1351 = vmatprep.subr.bf16.mxu0 0
  %1352 = vmatpush1.bf16.msra.mxu0 %v1288
  %1353 = vmatprep.mubr.bf16.mxu0 %v846
  %1354 = vmatmul.mubr.bf16.gmra.mrb[0].mxu0 %v845
  %v1355 = vpop.f32.mrb[0].mxu0
  %v1356 = vadd.f32 %v1171, %v1355
  %v1357 = vpop.f32.mrb[0].mxu0
  %v1358 = vpop.f32.mrb[0].mxu0
  %v1359 = vadd.f32 %v1174, %v1358
  %v1360 = vpop.f32.mrb[0].mxu0
  %1361 = vdwg.mxu0
  %1362 = vmatprep.subr.bf16.mxu0 0
  %1363 = vmatpush1.bf16.msra.mxu0 %v1289
  %1364 = vmatprep.subr.bf16.mxu0 0
  %1365 = vmatpush1.bf16.msra.mxu0 %v1290
  %1366 = vmatprep.subr.bf16.mxu0 0
  %1367 = vmatpush1.bf16.msra.mxu0 %v1291
  %1368 = vmatprep.subr.bf16.mxu0 0
  %1369 = vmatpush1.bf16.msra.mxu0 %v1292
  %1370 = vmatprep.subr.bf16.mxu0 0
  %1371 = vmatpush1.bf16.msra.mxu0 %v1293
  %1372 = vmatprep.subr.bf16.mxu0 0
  %1373 = vmatpush1.bf16.msra.mxu0 %v1294
  %1374 = vmatprep.subr.bf16.mxu0 0
  %1375 = vmatpush1.bf16.msra.mxu0 %v1295
  %1376 = vmatprep.subr.bf16.mxu0 0
  %1377 = vmatpush1.bf16.msra.mxu0 %v1296
  %1378 = vmatprep.subr.bf16.mxu0 0
  %1379 = vmatpush1.bf16.msra.mxu0 0
  %1380 = vmatprep.subr.bf16.mxu0 0
  %1381 = vmatpush1.bf16.msra.mxu0 0
  %1382 = vmatprep.subr.bf16.mxu0 0
  %1383 = vmatpush1.bf16.msra.mxu0 0
  %1384 = vmatprep.subr.bf16.mxu0 0
  %1385 = vmatpush1.bf16.msra.mxu0 0
  %1386 = vmatprep.subr.bf16.mxu0 0
  %1387 = vmatpush1.bf16.msra.mxu0 0
  %1388 = vmatprep.subr.bf16.mxu0 0
  %1389 = vmatpush1.bf16.msra.mxu0 0
  %1390 = vmatprep.subr.bf16.mxu0 0
  %1391 = vmatpush1.bf16.msra.mxu0 0
  %1392 = vmatprep.subr.bf16.mxu0 0
  %1393 = vmatpush1.bf16.msra.mxu0 0
  %1394 = vmatprep.mubr.bf16.mxu0 0
  %1395 = vmatmul.mubr.bf16.gmra.mrb[0].mxu0 %v847
  %v1396 = vpop.f32.mrb[0].mxu0
  %v1397 = vadd.f32 %v1356, %v1396
  %v1398 = vpop.f32.mrb[0].mxu0
  %v1399 = vpop.f32.mrb[0].mxu0
  %v1400 = vadd.f32 %v1359, %v1399
  %v1401 = vpop.f32.mrb[0].mxu0
  %1402 = vdwg.mxu0
  %v1403 = vadd.bf16 %v818, %v821
  %v1404 = vadd.bf16 %v819, %v822
  %v1405 = vadd.bf16 %v820, %v823
  %v1406 = vadd.bf16 %v1403, %v824
  %v1407 = vadd.bf16 %v1404, %v825
  %v1408 = vadd.bf16 %v1405, %v826
  %v1409 = vadd.bf16 %v1406, %v827
  %v1410 = vadd.bf16 %v1407, %v828
  %v1411 = vadd.bf16 %v1408, %v829
  %s1412 = scalar_lea.vmem %s2, 384
  %v1413 = vld [vmem:[%s1412] sm:$0xf]
  %v1414 = vld [vmem:[%s1412 + $0x4] sm:$0xf]
  %v1415 = vld [vmem:[%s1412 + $0x8] sm:$0xf]
  %v1416 = vld [vmem:[%s1412 + $0xc] sm:$0xf]
  %v1417 = vld [vmem:[%s1412 + $0x10] sm:$0xf]
  %v1418 = vld [vmem:[%s1412 + $0x14] sm:$0xf]
  %v1419 = vld [vmem:[%s1412 + $0x18] sm:$0xf]
  %v1420 = vld [vmem:[%s1412 + $0x1c] sm:$0xf]
  %v1421 = vld [vmem:[%s1412 + $0x20] sm:$0xf]
  %v1422 = vld [vmem:[%s1412 + $0x24] sm:$0xf]
  %v1423 = vld [vmem:[%s1412 + $0x28] sm:$0xf]
  %v1424 = vld [vmem:[%s1412 + $0x2c] sm:$0xf]
  %v1425 = vld [vmem:[%s1412 + $0x30] sm:$0xf]
  %v1426 = vld [vmem:[%s1412 + $0x34] sm:$0xf]
  %v1427 = vld [vmem:[%s1412 + $0x38] sm:$0xf]
  %v1428 = vld [vmem:[%s1412 + $0x3c] sm:$0xf]
  %v1429 = vld [vmem:[%s1412 + $0x40] sm:$0xf]
  %v1430 = vld [vmem:[%s1412 + $0x44] sm:$0xf]
  %v1431 = vld [vmem:[%s1412 + $0x48] sm:$0xf]
  %v1432 = vld [vmem:[%s1412 + $0x4c] sm:$0xf]
  %v1433 = vld [vmem:[%s1412 + $0x50] sm:$0xf]
  %v1434 = vld [vmem:[%s1412 + $0x54] sm:$0xf]
  %v1435 = vld [vmem:[%s1412 + $0x58] sm:$0xf]
  %v1436 = vld [vmem:[%s1412 + $0x5c] sm:$0xf]
  %v1437 = vld [vmem:[%s1412 + $0x60] sm:$0xf]
  %v1438 = vld [vmem:[%s1412 + $0x64] sm:$0xf]
  %v1439 = vld [vmem:[%s1412 + $0x68] sm:$0xf]
  %v1440 = vld [vmem:[%s1412 + $0x6c] sm:$0xf]
  %v1441 = vld [vmem:[%s1412 + $0x70] sm:$0xf]
  %v1442 = vld [vmem:[%s1412 + $0x74] sm:$0xf]
  %v1443 = vld [vmem:[%s1412 + $0x78] sm:$0xf]
  %v1444 = vld [vmem:[%s1412 + $0x7c] sm:$0xf]
  %v1445 = vld [vmem:[%s1412 + $0x80] sm:$0xf]
  %v1446 = vld [vmem:[%s1412 + $0x84] sm:$0xf]
  %v1447 = vld [vmem:[%s1412 + $0x88] sm:$0xf]
  %v1448 = vld [vmem:[%s1412 + $0x8c] sm:$0xf]
  %v1449 = vld [vmem:[%s1412 + $0x90] sm:$0xf]
  %v1450 = vld [vmem:[%s1412 + $0x94] sm:$0xf]
  %v1451 = vld [vmem:[%s1412 + $0x98] sm:$0xf]
  %v1452 = vld [vmem:[%s1412 + $0x9c] sm:$0xf]
  %v1453 = vld [vmem:[%s1412 + $0xa0] sm:$0xf]
  %v1454 = vld [vmem:[%s1412 + $0xa4] sm:$0xf]
  %v1455 = vld [vmem:[%s1412 + $0xa8] sm:$0xf]
  %v1456 = vld [vmem:[%s1412 + $0xac] sm:$0xf]
  %v1457 = vld [vmem:[%s1412 + $0xb0] sm:$0xf]
  %v1458 = vld [vmem:[%s1412 + $0xb4] sm:$0xf]
  %v1459 = vld [vmem:[%s1412 + $0xb8] sm:$0xf]
  %v1460 = vld [vmem:[%s1412 + $0xbc] sm:$0xf]
  %v1509 = vunpack.c.l.b16 %v1413
  %v1510 = vunpack.c.l.b16 %v1414
  %v1511 = vunpack.c.l.b16 %v1415
  %v1512 = vunpack.c.l.b16 %v1416
  %v1513 = vunpack.c.l.b16 %v1417
  %v1514 = vunpack.c.l.b16 %v1418
  %v1515 = vunpack.c.l.b16 %v1419
  %v1516 = vunpack.c.l.b16 %v1420
  %v1517 = vunpack.c.l.b16 %v1421
  %v1518 = vunpack.c.l.b16 %v1422
  %v1519 = vunpack.c.l.b16 %v1423
  %v1520 = vunpack.c.l.b16 %v1424
  %v1521 = vunpack.c.l.b16 %v1425
  %v1522 = vunpack.c.l.b16 %v1426
  %v1523 = vunpack.c.l.b16 %v1427
  %v1524 = vunpack.c.l.b16 %v1428
  %v1525 = vunpack.c.l.b16 %v1429
  %v1526 = vunpack.c.l.b16 %v1430
  %v1527 = vunpack.c.l.b16 %v1431
  %v1528 = vunpack.c.l.b16 %v1432
  %v1529 = vunpack.c.l.b16 %v1433
  %v1530 = vunpack.c.l.b16 %v1434
  %v1531 = vunpack.c.l.b16 %v1435
  %v1532 = vunpack.c.l.b16 %v1436
  %v1533 = vunpack.c.l.b16 %v1437
  %v1534 = vunpack.c.l.b16 %v1438
  %v1535 = vunpack.c.l.b16 %v1439
  %v1536 = vunpack.c.l.b16 %v1440
  %v1537 = vunpack.c.l.b16 %v1441
  %v1538 = vunpack.c.l.b16 %v1442
  %v1539 = vunpack.c.l.b16 %v1443
  %v1540 = vunpack.c.l.b16 %v1444
  %v1541 = vunpack.c.l.b16 %v1445
  %v1542 = vunpack.c.l.b16 %v1446
  %v1543 = vunpack.c.l.b16 %v1447
  %v1544 = vunpack.c.l.b16 %v1448
  %v1545 = vunpack.c.l.b16 %v1449
  %v1546 = vunpack.c.l.b16 %v1450
  %v1547 = vunpack.c.l.b16 %v1451
  %v1548 = vunpack.c.l.b16 %v1452
  %v1549 = vunpack.c.l.b16 %v1453
  %v1550 = vunpack.c.l.b16 %v1454
  %v1551 = vunpack.c.l.b16 %v1455
  %v1552 = vunpack.c.l.b16 %v1456
  %v1553 = vunpack.c.l.b16 %v1457
  %v1554 = vunpack.c.l.b16 %v1458
  %v1555 = vunpack.c.l.b16 %v1459
  %v1556 = vunpack.c.l.b16 %v1460
  %v1557 = vpack.c.b16 %v1510, %v1509
  %v1558 = vpack.c.b16 %v1512, %v1511
  %v1559 = vpack.c.b16 %v1514, %v1513
  %v1560 = vpack.c.b16 %v1516, %v1515
  %v1561 = vpack.c.b16 %v1518, %v1517
  %v1562 = vpack.c.b16 %v1520, %v1519
  %v1563 = vpack.c.b16 %v1522, %v1521
  %v1564 = vpack.c.b16 %v1524, %v1523
  %v1565 = vpack.c.b16 %v1526, %v1525
  %v1566 = vpack.c.b16 %v1528, %v1527
  %v1567 = vpack.c.b16 %v1530, %v1529
  %v1568 = vpack.c.b16 %v1532, %v1531
  %v1569 = vpack.c.b16 %v1534, %v1533
  %v1570 = vpack.c.b16 %v1536, %v1535
  %v1571 = vpack.c.b16 %v1538, %v1537
  %v1572 = vpack.c.b16 %v1540, %v1539
  %v1573 = vpack.c.b16 %v1542, %v1541
  %v1574 = vpack.c.b16 %v1544, %v1543
  %v1575 = vpack.c.b16 %v1546, %v1545
  %v1576 = vpack.c.b16 %v1548, %v1547
  %v1577 = vpack.c.b16 %v1550, %v1549
  %v1578 = vpack.c.b16 %v1552, %v1551
  %v1579 = vpack.c.b16 %v1554, %v1553
  %v1580 = vpack.c.b16 %v1556, %v1555
  %1605 = vmatprep.subr.bf16.mxu0 0
  %1606 = vmatpush1.bf16.msra.mxu0 %v1557
  %1607 = vmatprep.subr.bf16.mxu0 0
  %1608 = vmatpush1.bf16.msra.mxu0 %v1558
  %1609 = vmatprep.subr.bf16.mxu0 0
  %1610 = vmatpush1.bf16.msra.mxu0 %v1559
  %1611 = vmatprep.subr.bf16.mxu0 0
  %1612 = vmatpush1.bf16.msra.mxu0 %v1560
  %1613 = vmatprep.subr.bf16.mxu0 0
  %1614 = vmatpush1.bf16.msra.mxu0 %v1561
  %1615 = vmatprep.subr.bf16.mxu0 0
  %1616 = vmatpush1.bf16.msra.mxu0 %v1562
  %1617 = vmatprep.subr.bf16.mxu0 0
  %1618 = vmatpush1.bf16.msra.mxu0 %v1563
  %1619 = vmatprep.subr.bf16.mxu0 0
  %1620 = vmatpush1.bf16.msra.mxu0 %v1564
  %1621 = vmatprep.subr.bf16.mxu0 0
  %1622 = vmatpush1.bf16.msra.mxu0 %v1565
  %1623 = vmatprep.subr.bf16.mxu0 0
  %1624 = vmatpush1.bf16.msra.mxu0 %v1566
  %1625 = vmatprep.subr.bf16.mxu0 0
  %1626 = vmatpush1.bf16.msra.mxu0 %v1567
  %1627 = vmatprep.subr.bf16.mxu0 0
  %1628 = vmatpush1.bf16.msra.mxu0 %v1568
  %1629 = vmatprep.subr.bf16.mxu0 0
  %1630 = vmatpush1.bf16.msra.mxu0 %v1569
  %1631 = vmatprep.subr.bf16.mxu0 0
  %1632 = vmatpush1.bf16.msra.mxu0 %v1570
  %1633 = vmatprep.subr.bf16.mxu0 0
  %1634 = vmatpush1.bf16.msra.mxu0 %v1571
  %1635 = vmatprep.subr.bf16.mxu0 0
  %1636 = vmatpush1.bf16.msra.mxu0 %v1572
  %1637 = vmatprep.mubr.bf16.mxu0 %v1410
  %1638 = vmatmul.mubr.bf16.gmra.mrb[0].mxu0 %v1409
  %v1639 = vpop.f32.mrb[0].mxu0
  %v1640 = vadd.f32 0.0, %v1639
  %v1641 = vpop.f32.mrb[0].mxu0
  %v1642 = vpop.f32.mrb[0].mxu0
  %v1643 = vadd.f32 0.0, %v1642
  %v1644 = vpop.f32.mrb[0].mxu0
  %1645 = vdwg.mxu0
  %1646 = vmatprep.subr.bf16.mxu0 0
  %1647 = vmatpush1.bf16.msra.mxu0 %v1573
  %1648 = vmatprep.subr.bf16.mxu0 0
  %1649 = vmatpush1.bf16.msra.mxu0 %v1574
  %1650 = vmatprep.subr.bf16.mxu0 0
  %1651 = vmatpush1.bf16.msra.mxu0 %v1575
  %1652 = vmatprep.subr.bf16.mxu0 0
  %1653 = vmatpush1.bf16.msra.mxu0 %v1576
  %1654 = vmatprep.subr.bf16.mxu0 0
  %1655 = vmatpush1.bf16.msra.mxu0 %v1577
  %1656 = vmatprep.subr.bf16.mxu0 0
  %1657 = vmatpush1.bf16.msra.mxu0 %v1578
  %1658 = vmatprep.subr.bf16.mxu0 0
  %1659 = vmatpush1.bf16.msra.mxu0 %v1579
  %1660 = vmatprep.subr.bf16.mxu0 0
  %1661 = vmatpush1.bf16.msra.mxu0 %v1580
  %1662 = vmatprep.subr.bf16.mxu0 0
  %1663 = vmatpush1.bf16.msra.mxu0 0
  %1664 = vmatprep.subr.bf16.mxu0 0
  %1665 = vmatpush1.bf16.msra.mxu0 0
  %1666 = vmatprep.subr.bf16.mxu0 0
  %1667 = vmatpush1.bf16.msra.mxu0 0
  %1668 = vmatprep.subr.bf16.mxu0 0
  %1669 = vmatpush1.bf16.msra.mxu0 0
  %1670 = vmatprep.subr.bf16.mxu0 0
  %1671 = vmatpush1.bf16.msra.mxu0 0
  %1672 = vmatprep.subr.bf16.mxu0 0
  %1673 = vmatpush1.bf16.msra.mxu0 0
  %1674 = vmatprep.subr.bf16.mxu0 0
  %1675 = vmatpush1.bf16.msra.mxu0 0
  %1676 = vmatprep.subr.bf16.mxu0 0
  %1677 = vmatpush1.bf16.msra.mxu0 0
  %1678 = vmatprep.mubr.bf16.mxu0 0
  %1679 = vmatmul.mubr.bf16.gmra.mrb[0].mxu0 %v1411
  %v1680 = vpop.f32.mrb[0].mxu0
  %v1681 = vadd.f32 %v1640, %v1680
  %v1682 = vpop.f32.mrb[0].mxu0
  %v1683 = vpop.f32.mrb[0].mxu0
  %v1684 = vadd.f32 %v1643, %v1683
  %v1685 = vpop.f32.mrb[0].mxu0
  %1686 = vdwg.mxu0
  %v1687 = vadd.f32 %v1397, %v1681
  %v1688 = vadd.f32 %v1400, %v1684
  %v1689 = vadd.bf16 %v827, %v830
  %v1690 = vadd.bf16 %v828, %v831
  %v1691 = vadd.bf16 %v829, %v832
  %v1692 = vadd.bf16 %v1689, %v833
  %v1693 = vadd.bf16 %v1690, %v834
  %v1694 = vadd.bf16 %v1691, %v835
  %s1695 = scalar_lea.vmem %s2, 576
  %v1696 = vld [vmem:[%s1695] sm:$0xf]
  %v1697 = vld [vmem:[%s1695 + $0x4] sm:$0xf]
  %v1698 = vld [vmem:[%s1695 + $0x8] sm:$0xf]
  %v1699 = vld [vmem:[%s1695 + $0xc] sm:$0xf]
  %v1700 = vld [vmem:[%s1695 + $0x10] sm:$0xf]
  %v1701 = vld [vmem:[%s1695 + $0x14] sm:$0xf]
  %v1702 = vld [vmem:[%s1695 + $0x18] sm:$0xf]
  %v1703 = vld [vmem:[%s1695 + $0x1c] sm:$0xf]
  %v1704 = vld [vmem:[%s1695 + $0x20] sm:$0xf]
  %v1705 = vld [vmem:[%s1695 + $0x24] sm:$0xf]
  %v1706 = vld [vmem:[%s1695 + $0x28] sm:$0xf]
  %v1707 = vld [vmem:[%s1695 + $0x2c] sm:$0xf]
  %v1708 = vld [vmem:[%s1695 + $0x30] sm:$0xf]
  %v1709 = vld [vmem:[%s1695 + $0x34] sm:$0xf]
  %v1710 = vld [vmem:[%s1695 + $0x38] sm:$0xf]
  %v1711 = vld [vmem:[%s1695 + $0x3c] sm:$0xf]
  %v1712 = vld [vmem:[%s1695 + $0x40] sm:$0xf]
  %v1713 = vld [vmem:[%s1695 + $0x44] sm:$0xf]
  %v1714 = vld [vmem:[%s1695 + $0x48] sm:$0xf]
  %v1715 = vld [vmem:[%s1695 + $0x4c] sm:$0xf]
  %v1716 = vld [vmem:[%s1695 + $0x50] sm:$0xf]
  %v1717 = vld [vmem:[%s1695 + $0x54] sm:$0xf]
  %v1718 = vld [vmem:[%s1695 + $0x58] sm:$0xf]
  %v1719 = vld [vmem:[%s1695 + $0x5c] sm:$0xf]
  %v1720 = vld [vmem:[%s1695 + $0x60] sm:$0xf]
  %v1721 = vld [vmem:[%s1695 + $0x64] sm:$0xf]
  %v1722 = vld [vmem:[%s1695 + $0x68] sm:$0xf]
  %v1723 = vld [vmem:[%s1695 + $0x6c] sm:$0xf]
  %v1724 = vld [vmem:[%s1695 + $0x70] sm:$0xf]
  %v1725 = vld [vmem:[%s1695 + $0x74] sm:$0xf]
  %v1726 = vld [vmem:[%s1695 + $0x78] sm:$0xf]
  %v1727 = vld [vmem:[%s1695 + $0x7c] sm:$0xf]
  %v1728 = vld [vmem:[%s1695 + $0x80] sm:$0xf]
  %v1729 = vld [vmem:[%s1695 + $0x84] sm:$0xf]
  %v1730 = vld [vmem:[%s1695 + $0x88] sm:$0xf]
  %v1731 = vld [vmem:[%s1695 + $0x8c] sm:$0xf]
  %v1732 = vld [vmem:[%s1695 + $0x90] sm:$0xf]
  %v1733 = vld [vmem:[%s1695 + $0x94] sm:$0xf]
  %v1734 = vld [vmem:[%s1695 + $0x98] sm:$0xf]
  %v1735 = vld [vmem:[%s1695 + $0x9c] sm:$0xf]
  %v1736 = vld [vmem:[%s1695 + $0xa0] sm:$0xf]
  %v1737 = vld [vmem:[%s1695 + $0xa4] sm:$0xf]
  %v1738 = vld [vmem:[%s1695 + $0xa8] sm:$0xf]
  %v1739 = vld [vmem:[%s1695 + $0xac] sm:$0xf]
  %v1740 = vld [vmem:[%s1695 + $0xb0] sm:$0xf]
  %v1741 = vld [vmem:[%s1695 + $0xb4] sm:$0xf]
  %v1742 = vld [vmem:[%s1695 + $0xb8] sm:$0xf]
  %v1743 = vld [vmem:[%s1695 + $0xbc] sm:$0xf]
  %v1792 = vunpack.c.l.b16 %v1696
  %v1793 = vunpack.c.l.b16 %v1697
  %v1794 = vunpack.c.l.b16 %v1698
  %v1795 = vunpack.c.l.b16 %v1699
  %v1796 = vunpack.c.l.b16 %v1700
  %v1797 = vunpack.c.l.b16 %v1701
  %v1798 = vunpack.c.l.b16 %v1702
  %v1799 = vunpack.c.l.b16 %v1703
  %v1800 = vunpack.c.l.b16 %v1704
  %v1801 = vunpack.c.l.b16 %v1705
  %v1802 = vunpack.c.l.b16 %v1706
  %v1803 = vunpack.c.l.b16 %v1707
  %v1804 = vunpack.c.l.b16 %v1708
  %v1805 = vunpack.c.l.b16 %v1709
  %v1806 = vunpack.c.l.b16 %v1710
  %v1807 = vunpack.c.l.b16 %v1711
  %v1808 = vunpack.c.l.b16 %v1712
  %v1809 = vunpack.c.l.b16 %v1713
  %v1810 = vunpack.c.l.b16 %v1714
  %v1811 = vunpack.c.l.b16 %v1715
  %v1812 = vunpack.c.l.b16 %v1716
  %v1813 = vunpack.c.l.b16 %v1717
  %v1814 = vunpack.c.l.b16 %v1718
  %v1815 = vunpack.c.l.b16 %v1719
  %v1816 = vunpack.c.l.b16 %v1720
  %v1817 = vunpack.c.l.b16 %v1721
  %v1818 = vunpack.c.l.b16 %v1722
  %v1819 = vunpack.c.l.b16 %v1723
  %v1820 = vunpack.c.l.b16 %v1724
  %v1821 = vunpack.c.l.b16 %v1725
  %v1822 = vunpack.c.l.b16 %v1726
  %v1823 = vunpack.c.l.b16 %v1727
  %v1824 = vunpack.c.l.b16 %v1728
  %v1825 = vunpack.c.l.b16 %v1729
  %v1826 = vunpack.c.l.b16 %v1730
  %v1827 = vunpack.c.l.b16 %v1731
  %v1828 = vunpack.c.l.b16 %v1732
  %v1829 = vunpack.c.l.b16 %v1733
  %v1830 = vunpack.c.l.b16 %v1734
  %v1831 = vunpack.c.l.b16 %v1735
  %v1832 = vunpack.c.l.b16 %v1736
  %v1833 = vunpack.c.l.b16 %v1737
  %v1834 = vunpack.c.l.b16 %v1738
  %v1835 = vunpack.c.l.b16 %v1739
  %v1836 = vunpack.c.l.b16 %v1740
  %v1837 = vunpack.c.l.b16 %v1741
  %v1838 = vunpack.c.l.b16 %v1742
  %v1839 = vunpack.c.l.b16 %v1743
  %v1840 = vpack.c.b16 %v1793, %v1792
  %v1841 = vpack.c.b16 %v1795, %v1794
  %v1842 = vpack.c.b16 %v1797, %v1796
  %v1843 = vpack.c.b16 %v1799, %v1798
  %v1844 = vpack.c.b16 %v1801, %v1800
  %v1845 = vpack.c.b16 %v1803, %v1802
  %v1846 = vpack.c.b16 %v1805, %v1804
  %v1847 = vpack.c.b16 %v1807, %v1806
  %v1848 = vpack.c.b16 %v1809, %v1808
  %v1849 = vpack.c.b16 %v1811, %v1810
  %v1850 = vpack.c.b16 %v1813, %v1812
  %v1851 = vpack.c.b16 %v1815, %v1814
  %v1852 = vpack.c.b16 %v1817, %v1816
  %v1853 = vpack.c.b16 %v1819, %v1818
  %v1854 = vpack.c.b16 %v1821, %v1820
  %v1855 = vpack.c.b16 %v1823, %v1822
  %v1856 = vpack.c.b16 %v1825, %v1824
  %v1857 = vpack.c.b16 %v1827, %v1826
  %v1858 = vpack.c.b16 %v1829, %v1828
  %v1859 = vpack.c.b16 %v1831, %v1830
  %v1860 = vpack.c.b16 %v1833, %v1832
  %v1861 = vpack.c.b16 %v1835, %v1834
  %v1862 = vpack.c.b16 %v1837, %v1836
  %v1863 = vpack.c.b16 %v1839, %v1838
  %1888 = vmatprep.subr.bf16.mxu0 0
  %1889 = vmatpush1.bf16.msra.mxu0 %v1840
  %1890 = vmatprep.subr.bf16.mxu0 0
  %1891 = vmatpush1.bf16.msra.mxu0 %v1841
  %1892 = vmatprep.subr.bf16.mxu0 0
  %1893 = vmatpush1.bf16.msra.mxu0 %v1842
  %1894 = vmatprep.subr.bf16.mxu0 0
  %1895 = vmatpush1.bf16.msra.mxu0 %v1843
  %1896 = vmatprep.subr.bf16.mxu0 0
  %1897 = vmatpush1.bf16.msra.mxu0 %v1844
  %1898 = vmatprep.subr.bf16.mxu0 0
  %1899 = vmatpush1.bf16.msra.mxu0 %v1845
  %1900 = vmatprep.subr.bf16.mxu0 0
  %1901 = vmatpush1.bf16.msra.mxu0 %v1846
  %1902 = vmatprep.subr.bf16.mxu0 0
  %1903 = vmatpush1.bf16.msra.mxu0 %v1847
  %1904 = vmatprep.subr.bf16.mxu0 0
  %1905 = vmatpush1.bf16.msra.mxu0 %v1848
  %1906 = vmatprep.subr.bf16.mxu0 0
  %1907 = vmatpush1.bf16.msra.mxu0 %v1849
  %1908 = vmatprep.subr.bf16.mxu0 0
  %1909 = vmatpush1.bf16.msra.mxu0 %v1850
  %1910 = vmatprep.subr.bf16.mxu0 0
  %1911 = vmatpush1.bf16.msra.mxu0 %v1851
  %1912 = vmatprep.subr.bf16.mxu0 0
  %1913 = vmatpush1.bf16.msra.mxu0 %v1852
  %1914 = vmatprep.subr.bf16.mxu0 0
  %1915 = vmatpush1.bf16.msra.mxu0 %v1853
  %1916 = vmatprep.subr.bf16.mxu0 0
  %1917 = vmatpush1.bf16.msra.mxu0 %v1854
  %1918 = vmatprep.subr.bf16.mxu0 0
  %1919 = vmatpush1.bf16.msra.mxu0 %v1855
  %1920 = vmatprep.mubr.bf16.mxu0 %v1693
  %1921 = vmatmul.mubr.bf16.gmra.mrb[0].mxu0 %v1692
  %v1922 = vpop.f32.mrb[0].mxu0
  %v1923 = vadd.f32 0.0, %v1922
  %v1924 = vpop.f32.mrb[0].mxu0
  %v1925 = vpop.f32.mrb[0].mxu0
  %v1926 = vadd.f32 0.0, %v1925
  %v1927 = vpop.f32.mrb[0].mxu0
  %1928 = vdwg.mxu0
  %1929 = vmatprep.subr.bf16.mxu0 0
  %1930 = vmatpush1.bf16.msra.mxu0 %v1856
  %1931 = vmatprep.subr.bf16.mxu0 0
  %1932 = vmatpush1.bf16.msra.mxu0 %v1857
  %1933 = vmatprep.subr.bf16.mxu0 0
  %1934 = vmatpush1.bf16.msra.mxu0 %v1858
  %1935 = vmatprep.subr.bf16.mxu0 0
  %1936 = vmatpush1.bf16.msra.mxu0 %v1859
  %1937 = vmatprep.subr.bf16.mxu0 0
  %1938 = vmatpush1.bf16.msra.mxu0 %v1860
  %1939 = vmatprep.subr.bf16.mxu0 0
  %1940 = vmatpush1.bf16.msra.mxu0 %v1861
  %1941 = vmatprep.subr.bf16.mxu0 0
  %1942 = vmatpush1.bf16.msra.mxu0 %v1862
  %1943 = vmatprep.subr.bf16.mxu0 0
  %1944 = vmatpush1.bf16.msra.mxu0 %v1863
  %1945 = vmatprep.subr.bf16.mxu0 0
  %1946 = vmatpush1.bf16.msra.mxu0 0
  %1947 = vmatprep.subr.bf16.mxu0 0
  %1948 = vmatpush1.bf16.msra.mxu0 0
  %1949 = vmatprep.subr.bf16.mxu0 0
  %1950 = vmatpush1.bf16.msra.mxu0 0
  %1951 = vmatprep.subr.bf16.mxu0 0
  %1952 = vmatpush1.bf16.msra.mxu0 0
  %1953 = vmatprep.subr.bf16.mxu0 0
  %1954 = vmatpush1.bf16.msra.mxu0 0
  %1955 = vmatprep.subr.bf16.mxu0 0
  %1956 = vmatpush1.bf16.msra.mxu0 0
  %1957 = vmatprep.subr.bf16.mxu0 0
  %1958 = vmatpush1.bf16.msra.mxu0 0
  %1959 = vmatprep.subr.bf16.mxu0 0
  %1960 = vmatpush1.bf16.msra.mxu0 0
  %1961 = vmatprep.mubr.bf16.mxu0 0
  %1962 = vmatmul.mubr.bf16.gmra.mrb[0].mxu0 %v1694
  %v1963 = vpop.f32.mrb[0].mxu0
  %v1964 = vadd.f32 %v1923, %v1963
  %v1965 = vpop.f32.mrb[0].mxu0
  %v1966 = vpop.f32.mrb[0].mxu0
  %v1967 = vadd.f32 %v1926, %v1966
  %v1968 = vpop.f32.mrb[0].mxu0
  %1969 = vdwg.mxu0
  %v1970 = vadd.f32 %v1687, %v1964
  %v1971 = vadd.f32 %v1688, %v1967
  %v1972 = vadd.bf16 %v833, %v836
  %v1973 = vadd.bf16 %v834, %v837
  %v1974 = vadd.bf16 %v835, %v838
  %v1975 = vadd.bf16 %v1972, %v839
  %v1976 = vadd.bf16 %v1973, %v840
  %v1977 = vadd.bf16 %v1974, %v841
  %s1978 = scalar_lea.vmem %s2, 768
  %v1979 = vld [vmem:[%s1978] sm:$0xf]
  %v1980 = vld [vmem:[%s1978 + $0x4] sm:$0xf]
  %v1981 = vld [vmem:[%s1978 + $0x8] sm:$0xf]
  %v1982 = vld [vmem:[%s1978 + $0xc] sm:$0xf]
  %v1983 = vld [vmem:[%s1978 + $0x10] sm:$0xf]
  %v1984 = vld [vmem:[%s1978 + $0x14] sm:$0xf]
  %v1985 = vld [vmem:[%s1978 + $0x18] sm:$0xf]
  %v1986 = vld [vmem:[%s1978 + $0x1c] sm:$0xf]
  %v1987 = vld [vmem:[%s1978 + $0x20] sm:$0xf]
  %v1988 = vld [vmem:[%s1978 + $0x24] sm:$0xf]
  %v1989 = vld [vmem:[%s1978 + $0x28] sm:$0xf]
  %v1990 = vld [vmem:[%s1978 + $0x2c] sm:$0xf]
  %v1991 = vld [vmem:[%s1978 + $0x30] sm:$0xf]
  %v1992 = vld [vmem:[%s1978 + $0x34] sm:$0xf]
  %v1993 = vld [vmem:[%s1978 + $0x38] sm:$0xf]
  %v1994 = vld [vmem:[%s1978 + $0x3c] sm:$0xf]
  %v1995 = vld [vmem:[%s1978 + $0x40] sm:$0xf]
  %v1996 = vld [vmem:[%s1978 + $0x44] sm:$0xf]
  %v1997 = vld [vmem:[%s1978 + $0x48] sm:$0xf]
  %v1998 = vld [vmem:[%s1978 + $0x4c] sm:$0xf]
  %v1999 = vld [vmem:[%s1978 + $0x50] sm:$0xf]
  %v2000 = vld [vmem:[%s1978 + $0x54] sm:$0xf]
  %v2001 = vld [vmem:[%s1978 + $0x58] sm:$0xf]
  %v2002 = vld [vmem:[%s1978 + $0x5c] sm:$0xf]
  %v2003 = vld [vmem:[%s1978 + $0x60] sm:$0xf]
  %v2004 = vld [vmem:[%s1978 + $0x64] sm:$0xf]
  %v2005 = vld [vmem:[%s1978 + $0x68] sm:$0xf]
  %v2006 = vld [vmem:[%s1978 + $0x6c] sm:$0xf]
  %v2007 = vld [vmem:[%s1978 + $0x70] sm:$0xf]
  %v2008 = vld [vmem:[%s1978 + $0x74] sm:$0xf]
  %v2009 = vld [vmem:[%s1978 + $0x78] sm:$0xf]
  %v2010 = vld [vmem:[%s1978 + $0x7c] sm:$0xf]
  %v2011 = vld [vmem:[%s1978 + $0x80] sm:$0xf]
  %v2012 = vld [vmem:[%s1978 + $0x84] sm:$0xf]
  %v2013 = vld [vmem:[%s1978 + $0x88] sm:$0xf]
  %v2014 = vld [vmem:[%s1978 + $0x8c] sm:$0xf]
  %v2015 = vld [vmem:[%s1978 + $0x90] sm:$0xf]
  %v2016 = vld [vmem:[%s1978 + $0x94] sm:$0xf]
  %v2017 = vld [vmem:[%s1978 + $0x98] sm:$0xf]
  %v2018 = vld [vmem:[%s1978 + $0x9c] sm:$0xf]
  %v2019 = vld [vmem:[%s1978 + $0xa0] sm:$0xf]
  %v2020 = vld [vmem:[%s1978 + $0xa4] sm:$0xf]
  %v2021 = vld [vmem:[%s1978 + $0xa8] sm:$0xf]
  %v2022 = vld [vmem:[%s1978 + $0xac] sm:$0xf]
  %v2023 = vld [vmem:[%s1978 + $0xb0] sm:$0xf]
  %v2024 = vld [vmem:[%s1978 + $0xb4] sm:$0xf]
  %v2025 = vld [vmem:[%s1978 + $0xb8] sm:$0xf]
  %v2026 = vld [vmem:[%s1978 + $0xbc] sm:$0xf]
  %v2075 = vunpack.c.l.b16 %v1979
  %v2076 = vunpack.c.l.b16 %v1980
  %v2077 = vunpack.c.l.b16 %v1981
  %v2078 = vunpack.c.l.b16 %v1982
  %v2079 = vunpack.c.l.b16 %v1983
  %v2080 = vunpack.c.l.b16 %v1984
  %v2081 = vunpack.c.l.b16 %v1985
  %v2082 = vunpack.c.l.b16 %v1986
  %v2083 = vunpack.c.l.b16 %v1987
  %v2084 = vunpack.c.l.b16 %v1988
  %v2085 = vunpack.c.l.b16 %v1989
  %v2086 = vunpack.c.l.b16 %v1990
  %v2087 = vunpack.c.l.b16 %v1991
  %v2088 = vunpack.c.l.b16 %v1992
  %v2089 = vunpack.c.l.b16 %v1993
  %v2090 = vunpack.c.l.b16 %v1994
  %v2091 = vunpack.c.l.b16 %v1995
  %v2092 = vunpack.c.l.b16 %v1996
  %v2093 = vunpack.c.l.b16 %v1997
  %v2094 = vunpack.c.l.b16 %v1998
  %v2095 = vunpack.c.l.b16 %v1999
  %v2096 = vunpack.c.l.b16 %v2000
  %v2097 = vunpack.c.l.b16 %v2001
  %v2098 = vunpack.c.l.b16 %v2002
  %v2099 = vunpack.c.l.b16 %v2003
  %v2100 = vunpack.c.l.b16 %v2004
  %v2101 = vunpack.c.l.b16 %v2005
  %v2102 = vunpack.c.l.b16 %v2006
  %v2103 = vunpack.c.l.b16 %v2007
  %v2104 = vunpack.c.l.b16 %v2008
  %v2105 = vunpack.c.l.b16 %v2009
  %v2106 = vunpack.c.l.b16 %v2010
  %v2107 = vunpack.c.l.b16 %v2011
  %v2108 = vunpack.c.l.b16 %v2012
  %v2109 = vunpack.c.l.b16 %v2013
  %v2110 = vunpack.c.l.b16 %v2014
  %v2111 = vunpack.c.l.b16 %v2015
  %v2112 = vunpack.c.l.b16 %v2016
  %v2113 = vunpack.c.l.b16 %v2017
  %v2114 = vunpack.c.l.b16 %v2018
  %v2115 = vunpack.c.l.b16 %v2019
  %v2116 = vunpack.c.l.b16 %v2020
  %v2117 = vunpack.c.l.b16 %v2021
  %v2118 = vunpack.c.l.b16 %v2022
  %v2119 = vunpack.c.l.b16 %v2023
  %v2120 = vunpack.c.l.b16 %v2024
  %v2121 = vunpack.c.l.b16 %v2025
  %v2122 = vunpack.c.l.b16 %v2026
  %v2123 = vpack.c.b16 %v2076, %v2075
  %v2124 = vpack.c.b16 %v2078, %v2077
  %v2125 = vpack.c.b16 %v2080, %v2079
  %v2126 = vpack.c.b16 %v2082, %v2081
  %v2127 = vpack.c.b16 %v2084, %v2083
  %v2128 = vpack.c.b16 %v2086, %v2085
  %v2129 = vpack.c.b16 %v2088, %v2087
  %v2130 = vpack.c.b16 %v2090, %v2089
  %v2131 = vpack.c.b16 %v2092, %v2091
  %v2132 = vpack.c.b16 %v2094, %v2093
  %v2133 = vpack.c.b16 %v2096, %v2095
  %v2134 = vpack.c.b16 %v2098, %v2097
  %v2135 = vpack.c.b16 %v2100, %v2099
  %v2136 = vpack.c.b16 %v2102, %v2101
  %v2137 = vpack.c.b16 %v2104, %v2103
  %v2138 = vpack.c.b16 %v2106, %v2105
  %v2139 = vpack.c.b16 %v2108, %v2107
  %v2140 = vpack.c.b16 %v2110, %v2109
  %v2141 = vpack.c.b16 %v2112, %v2111
  %v2142 = vpack.c.b16 %v2114, %v2113
  %v2143 = vpack.c.b16 %v2116, %v2115
  %v2144 = vpack.c.b16 %v2118, %v2117
  %v2145 = vpack.c.b16 %v2120, %v2119
  %v2146 = vpack.c.b16 %v2122, %v2121
  %2171 = vmatprep.subr.bf16.mxu0 0
  %2172 = vmatpush1.bf16.msra.mxu0 %v2123
  %2173 = vmatprep.subr.bf16.mxu0 0
  %2174 = vmatpush1.bf16.msra.mxu0 %v2124
  %2175 = vmatprep.subr.bf16.mxu0 0
  %2176 = vmatpush1.bf16.msra.mxu0 %v2125
  %2177 = vmatprep.subr.bf16.mxu0 0
  %2178 = vmatpush1.bf16.msra.mxu0 %v2126
  %2179 = vmatprep.subr.bf16.mxu0 0
  %2180 = vmatpush1.bf16.msra.mxu0 %v2127
  %2181 = vmatprep.subr.bf16.mxu0 0
  %2182 = vmatpush1.bf16.msra.mxu0 %v2128
  %2183 = vmatprep.subr.bf16.mxu0 0
  %2184 = vmatpush1.bf16.msra.mxu0 %v2129
  %2185 = vmatprep.subr.bf16.mxu0 0
  %2186 = vmatpush1.bf16.msra.mxu0 %v2130
  %2187 = vmatprep.subr.bf16.mxu0 0
  %2188 = vmatpush1.bf16.msra.mxu0 %v2131
  %2189 = vmatprep.subr.bf16.mxu0 0
  %2190 = vmatpush1.bf16.msra.mxu0 %v2132
  %2191 = vmatprep.subr.bf16.mxu0 0
  %2192 = vmatpush1.bf16.msra.mxu0 %v2133
  %2193 = vmatprep.subr.bf16.mxu0 0
  %2194 = vmatpush1.bf16.msra.mxu0 %v2134
  %2195 = vmatprep.subr.bf16.mxu0 0
  %2196 = vmatpush1.bf16.msra.mxu0 %v2135
  %2197 = vmatprep.subr.bf16.mxu0 0
  %2198 = vmatpush1.bf16.msra.mxu0 %v2136
  %2199 = vmatprep.subr.bf16.mxu0 0
  %2200 = vmatpush1.bf16.msra.mxu0 %v2137
  %2201 = vmatprep.subr.bf16.mxu0 0
  %2202 = vmatpush1.bf16.msra.mxu0 %v2138
  %2203 = vmatprep.mubr.bf16.mxu0 %v1976
  %2204 = vmatmul.mubr.bf16.gmra.mrb[0].mxu0 %v1975
  %v2205 = vpop.f32.mrb[0].mxu0
  %v2206 = vadd.f32 0.0, %v2205
  %v2207 = vpop.f32.mrb[0].mxu0
  %v2208 = vpop.f32.mrb[0].mxu0
  %v2209 = vadd.f32 0.0, %v2208
  %v2210 = vpop.f32.mrb[0].mxu0
  %2211 = vdwg.mxu0
  %2212 = vmatprep.subr.bf16.mxu0 0
  %2213 = vmatpush1.bf16.msra.mxu0 %v2139
  %2214 = vmatprep.subr.bf16.mxu0 0
  %2215 = vmatpush1.bf16.msra.mxu0 %v2140
  %2216 = vmatprep.subr.bf16.mxu0 0
  %2217 = vmatpush1.bf16.msra.mxu0 %v2141
  %2218 = vmatprep.subr.bf16.mxu0 0
  %2219 = vmatpush1.bf16.msra.mxu0 %v2142
  %2220 = vmatprep.subr.bf16.mxu0 0
  %2221 = vmatpush1.bf16.msra.mxu0 %v2143
  %2222 = vmatprep.subr.bf16.mxu0 0
  %2223 = vmatpush1.bf16.msra.mxu0 %v2144
  %2224 = vmatprep.subr.bf16.mxu0 0
  %2225 = vmatpush1.bf16.msra.mxu0 %v2145
  %2226 = vmatprep.subr.bf16.mxu0 0
  %2227 = vmatpush1.bf16.msra.mxu0 %v2146
  %2228 = vmatprep.subr.bf16.mxu0 0
  %2229 = vmatpush1.bf16.msra.mxu0 0
  %2230 = vmatprep.subr.bf16.mxu0 0
  %2231 = vmatpush1.bf16.msra.mxu0 0
  %2232 = vmatprep.subr.bf16.mxu0 0
  %2233 = vmatpush1.bf16.msra.mxu0 0
  %2234 = vmatprep.subr.bf16.mxu0 0
  %2235 = vmatpush1.bf16.msra.mxu0 0
  %2236 = vmatprep.subr.bf16.mxu0 0
  %2237 = vmatpush1.bf16.msra.mxu0 0
  %2238 = vmatprep.subr.bf16.mxu0 0
  %2239 = vmatpush1.bf16.msra.mxu0 0
  %2240 = vmatprep.subr.bf16.mxu0 0
  %2241 = vmatpush1.bf16.msra.mxu0 0
  %2242 = vmatprep.subr.bf16.mxu0 0
  %2243 = vmatpush1.bf16.msra.mxu0 0
  %2244 = vmatprep.mubr.bf16.mxu0 0
  %2245 = vmatmul.mubr.bf16.gmra.mrb[0].mxu0 %v1977
  %v2246 = vpop.f32.mrb[0].mxu0
  %v2247 = vadd.f32 %v2206, %v2246
  %v2248 = vpop.f32.mrb[0].mxu0
  %v2249 = vpop.f32.mrb[0].mxu0
  %v2250 = vadd.f32 %v2209, %v2249
  %v2251 = vpop.f32.mrb[0].mxu0
  %2252 = vdwg.mxu0
  %v2253 = vadd.f32 %v1970, %v2247
  %v2254 = vadd.f32 %v1971, %v2250
  %v2255 = vld [vmem:[%s3] sm:$0x1]
  %v2257 = vlaneseq
  %v2258 = vshrl.u32 %v2257, 7
  %v2259 = vsub.s32 0, %v2258
  %v2260 = vrot.slane %v2255, %v2259
  %v2262 = vadd.f32 %v2253, %v2260
  %v2263 = vadd.f32 %v2254, %v2260
  %v2264 = vmax.f32 %v2262, 0.0
  %v2265 = vmax.f32 %v2263, 0.0
  %v2266 = vpack.c.bf16 %v2265, %v2264
  %v2267 = vld [vmem:[%s4] sm:$0xff]
  %v2268 = vld [vmem:[%s4 + $0x8] sm:$0xff]
  %v2269 = vld [vmem:[%s4 + $0x10] sm:$0xff]
  %v2270 = vld [vmem:[%s4 + $0x18] sm:$0xff]
  %v2271 = vld [vmem:[%s4 + $0x20] sm:$0xff]
  %v2272 = vld [vmem:[%s4 + $0x28] sm:$0xff]
  %v2273 = vld [vmem:[%s4 + $0x30] sm:$0xff]
  %v2274 = vld [vmem:[%s4 + $0x38] sm:$0xff]
  %v2275 = vld [vmem:[%s5] sm:$0x3]
  %v2277 = vlaneseq
  %v2278 = vshrl.u32 %v2277, 7
  %v2279 = vsub.s32 0, %v2278
  %v2280 = vrot.slane %v2275, %v2279
  %v2281 = vlaneseq
  %v2282 = vshrl.u32 %v2281, 7
  %v2283 = vsub.s32 1, %v2282
  %v2284 = vrot.slane %v2275, %v2283
  %v2295 = vunpack.c.l.b16 %v2267
  %v2296 = vunpack.c.h.b16 %v2267
  %v2297 = vunpack.c.l.b16 %v2268
  %v2298 = vunpack.c.h.b16 %v2268
  %v2299 = vunpack.c.l.b16 %v2269
  %v2300 = vunpack.c.h.b16 %v2269
  %v2301 = vunpack.c.l.b16 %v2270
  %v2302 = vunpack.c.h.b16 %v2270
  %v2303 = vunpack.c.l.b16 %v2271
  %v2304 = vunpack.c.h.b16 %v2271
  %v2305 = vunpack.c.l.b16 %v2272
  %v2306 = vunpack.c.h.b16 %v2272
  %v2307 = vunpack.c.l.b16 %v2273
  %v2308 = vunpack.c.h.b16 %v2273
  %v2309 = vunpack.c.l.b16 %v2274
  %v2310 = vunpack.c.h.b16 %v2274
  %v2311 = vpack.c.b16 %v2297, %v2295
  %v2312 = vpack.c.b16 %v2298, %v2296
  %v2313 = vpack.c.b16 %v2301, %v2299
  %v2314 = vpack.c.b16 %v2302, %v2300
  %v2315 = vpack.c.b16 %v2305, %v2303
  %v2316 = vpack.c.b16 %v2306, %v2304
  %v2317 = vpack.c.b16 %v2309, %v2307
  %v2318 = vpack.c.b16 %v2310, %v2308
  %vm2327 = vcmask 523264
  %v2329 = vsel %vm2327, %v2266, 0
  %2331 = vmatprep.subr.bf16.mxu0 %v2312
  %2332 = vmatpush1.bf16.msra.mxu0 %v2311
  %2333 = vmatprep.subr.bf16.mxu0 %v2314
  %2334 = vmatpush1.bf16.msra.mxu0 %v2313
  %2335 = vmatprep.subr.bf16.mxu0 %v2316
  %2336 = vmatpush1.bf16.msra.mxu0 %v2315
  %2337 = vmatprep.subr.bf16.mxu0 %v2318
  %2338 = vmatpush1.bf16.msra.mxu0 %v2317
  %2339 = vmatprep.subr.bf16.mxu0 0
  %2340 = vmatpush1.bf16.msra.mxu0 0
  %2341 = vmatprep.subr.bf16.mxu0 0
  %2342 = vmatpush1.bf16.msra.mxu0 0
  %2343 = vmatprep.subr.bf16.mxu0 0
  %2344 = vmatpush1.bf16.msra.mxu0 0
  %2345 = vmatprep.subr.bf16.mxu0 0
  %2346 = vmatpush1.bf16.msra.mxu0 0
  %2347 = vmatprep.subr.bf16.mxu0 0
  %2348 = vmatpush1.bf16.msra.mxu0 0
  %2349 = vmatprep.subr.bf16.mxu0 0
  %2350 = vmatpush1.bf16.msra.mxu0 0
  %2351 = vmatprep.subr.bf16.mxu0 0
  %2352 = vmatpush1.bf16.msra.mxu0 0
  %2353 = vmatprep.subr.bf16.mxu0 0
  %2354 = vmatpush1.bf16.msra.mxu0 0
  %2355 = vmatprep.subr.bf16.mxu0 0
  %2356 = vmatpush1.bf16.msra.mxu0 0
  %2357 = vmatprep.subr.bf16.mxu0 0
  %2358 = vmatpush1.bf16.msra.mxu0 0
  %2359 = vmatprep.subr.bf16.mxu0 0
  %2360 = vmatpush1.bf16.msra.mxu0 0
  %2361 = vmatprep.subr.bf16.mxu0 0
  %2362 = vmatpush1.bf16.msra.mxu0 0
  %2363 = vmatprep.mubr.bf16.mxu0 0
  %2364 = vmatmul.mubr.bf16.gmra.mrb[0].mxu0 %v2329
  %v2365 = vpop.f32.mrb[0].mxu0
  %v2366 = vadd.f32 %v2280, %v2365
  %v2367 = vpop.f32.mrb[0].mxu0
  %v2368 = vadd.f32 %v2284, %v2367
  %v2369 = vpop.f32.mrb[0].mxu0
  %v2370 = vadd.f32 %v2280, %v2369
  %v2371 = vpop.f32.mrb[0].mxu0
  %v2372 = vadd.f32 %v2284, %v2371
  %2373 = vdwg.mxu0
  %2374 = vst [vmem:[%s6] sm:$0xff] %v2366
  %2375 = vst [vmem:[%s6 + $0x8] sm:$0xff] %v2368
  %2376 = vst [vmem:[%s6 + $0x10] sm:$0xff] %v2370
  %2377 = vst [vmem:[%s6 + $0x18] sm:$0xff] %v2372
  // Predicated region
  $region26: #{vanilla_cnn_forward.1} parent=0 // pred_check
    _
  $region27: #{vanilla_cnn_forward.1} parent=0 // pred_check_branch
    %2379 = sbr.rel (0) target = $region29
  $region28: #{vanilla_cnn_forward.1} parent=0 // pred_region
    _
  $region29: #{vanilla_cnn_forward.1} parent=0 // pred_fallthru
    _
  // Predicated region
  $region30: #{vanilla_cnn_forward.1} parent=0 // pred_check
    _
  $region31: #{vanilla_cnn_forward.1} parent=0 // pred_check_branch
    %2381 = sbr.rel (0) target = $region33
  $region32: #{vanilla_cnn_forward.1} parent=0 // pred_region
    _
  $region33: #{vanilla_cnn_forward.1} parent=0 // pred_fallthru
    _

</llo_original>
